<compile_context>
chip_gen: v6e
topology: v6e:2x2x1
jax: 0.10.0
libtpu: 0.0.40
codegen_flags: <defaults>
</compile_context>

<pallas_src>
import functools
import math

import jax
import jax.numpy as jnp
from jax.experimental import pallas as pl
from jax.experimental.pallas import tpu as pltpu

_HALF_LOG_2PI = 0.5 * math.log(2.0 * math.pi)
_SQRT_HALF = math.sqrt(0.5)
_LANE_WIDTH = 128
_STRIP = 32            # packed rows per inner-loop step (keeps the chain in vregs)
_MIN_GRID_STEPS = 4    # >= 2 steps per v7x TensorCore; keeps the pipeline busy


def _round_up(x, m):
    return ((x + m - 1) // m) * m


def _cdiv(a, b):
    return -(-a // b)


def _cwpdgm_kernel(p_ref, z_ref, prm_ref, sel_ref, out_ref, *, n_mixes, n_classes, strip):
    """One batch tile of the class-weighted per-dim Gaussian mixture log-prob.

    p_ref   : (C, M)   softmax(weights), SMEM (scalar prefetch)
    z_ref   : (TR, L)  lane-packed batch tile (FOLD batch rows per packed row)
    prm_ref : (3M, L)  rows [0,M)=a, [M,2M)=b, [2M,3M)=cst, lane-tiled
    sel_ref : (C+1, L, OUT_W) fold-aware block selectors (sum / per-class placement)
    out_ref : (TR, OUT_W) packed output; column f*C + c = class-c logprob of fold row f
    """
    n_strips = z_ref.shape[0] // strip

    @pl.loop(0, n_strips)
    def _(si):
        row0 = pl.multiple_of(si * strip, strip)
        z = z_ref[pl.ds(row0, strip), :]                              # (strip, L)

        # Pass 1: per-mixture per-dim log prob, lp_m = cst_m - (z*a_m - b_m)^2 (VPU only).
        lp = []
        for m in range(n_mixes):
            a = prm_ref[m:m + 1, :]                                   # (1, L) broadcasts
            b = prm_ref[n_mixes + m:n_mixes + m + 1, :]
            cst = prm_ref[2 * n_mixes + m:2 * n_mixes + m + 1, :]
            t = z * a - b
            lp.append(cst - t * t)                                    # (strip, L)

        lpmax = lp[0]
        for m in range(1, n_mixes):
            lpmax = jnp.maximum(lpmax, lp[m])

        # Pass 2: s_c = sum_m softmax(weights)[c,m] * exp(lp_m - lpmax)
        # (exp on EUP; class weights read as SMEM scalars -> scalar-broadcast FMAs.
        #  Shift is the unweighted max: benign unless a class weight on the dominant
        #  mixture underflows f32 — same behavior as the previously validated kernel.)
        s_acc = [None] * n_classes
        for m in range(n_mixes):
            e = jnp.exp(lp[m] - lpmax)
            for c in range(n_classes):
                term = p_ref[c, m] * e
                s_acc[c] = term if s_acc[c] is None else s_acc[c] + term

        # out[:, f*C + c] = sum_{lanes of fold f} (lpmax + log(s_c)), done as tiny
        # matmuls against constant selectors on the otherwise idle MXU (no XLU
        # lane reductions, single full-width store per row group).
        acc = jnp.dot(lpmax, sel_ref[0], preferred_element_type=jnp.float32)
        for c in range(n_classes):
            acc = acc + jnp.dot(jnp.log(s_acc[c]), sel_ref[1 + c],
                                preferred_element_type=jnp.float32)
        out_ref[pl.ds(row0, strip), :] = acc.astype(out_ref.dtype)


def class_weighted_per_dim_gaussian_mixture(z, class_means, class_log_stds, weights,
                                            *, vmem_budget_bytes=16 * 1024 * 1024):
    """Forward pass. Returns (z, lp_weighted) with lp_weighted of shape (N, n_classes)."""
    N, D = z.shape
    M, Dm = class_means.shape
    C, Mw = weights.shape
    assert Dm == D and Mw == M

    f32 = jnp.float32
    means = class_means.astype(f32)
    log_stds = class_log_stds.astype(f32)
    w32 = weights.astype(f32)

    # Lane packing: fold FOLD batch rows into the 128-lane axis.
    fold = _LANE_WIDTH // D if (D <= _LANE_WIDTH and _LANE_WIDTH % D == 0) else 1
    lanes = fold * D

    # ---- parameter-only math, hoisted out of the kernel (factored form) ----
    inv_std = jnp.exp(-log_stds)                                      # (M, D)
    a = inv_std * _SQRT_HALF
    b = means * inv_std * _SQRT_HALF
    cst = -log_stds - _HALF_LOG_2PI
    params = jnp.tile(jnp.concatenate([a, b, cst], axis=0), (1, fold))  # (3M, lanes)

    wmax = jnp.max(w32, axis=1, keepdims=True)                        # softmax(weights, 1)
    ew = jnp.exp(w32 - wmax)
    p = ew / jnp.sum(ew, axis=1, keepdims=True)                       # (C, M) -> SMEM

    # Fold-aware block selectors, padded to a lane-dense (multiple-of-128) output width.
    out_w = _round_up(fold * C, _LANE_WIDTH)
    lane_f = jnp.arange(lanes) // D                                   # fold id of each lane
    col = jnp.arange(out_w)
    col_f = col // C
    col_c = col % C
    valid = col < fold * C
    base = (lane_f[:, None] == col_f[None, :]) & valid[None, :]       # (lanes, out_w)
    sel = jnp.stack(
        [base.astype(f32)]
        + [(base & (col_c[None, :] == c)).astype(f32) for c in range(C)],
        axis=0)                                                       # (C+1, lanes, out_w)

    # ---- batch tiling in packed rows: >= _MIN_GRID_STEPS steps, VMEM-capped tile ----
    rows = _cdiv(N, fold)
    row_bytes = 2 * (lanes + out_w) * 4          # double-buffered z + out per packed row
    resident_bytes = 2 * 4 * (int(params.size) + int(sel.size))
    max_tile_rows = max(
        _STRIP, ((vmem_budget_bytes - resident_bytes) // row_bytes) // _STRIP * _STRIP)
    tile_rows = min(max(_cdiv(rows, _MIN_GRID_STEPS), _STRIP), max_tile_rows)
    tile_rows = _round_up(tile_rows, _STRIP)
    rows_pad = _round_up(rows, tile_rows)
    n_pad = rows_pad * fold

    z_in = z.astype(f32)
    if n_pad != N:
        z_in = jnp.pad(z_in, ((0, n_pad - N), (0, 0)))
    z_pk = z_in.reshape(rows_pad, lanes)                              # lane-packed batch

    kernel = functools.partial(_cwpdgm_kernel, n_mixes=M, n_classes=C, strip=_STRIP)

    out_pk = pl.pallas_call(
        kernel,
        out_shape=jax.ShapeDtypeStruct((rows_pad, out_w), f32),
        grid_spec=pltpu.PrefetchScalarGridSpec(
            num_scalar_prefetch=1,                                    # p -> SMEM
            grid=(rows_pad // tile_rows,),
            in_specs=[
                pl.BlockSpec((tile_rows, lanes), lambda i, p_s: (i, 0)),        # z tile
                pl.BlockSpec((3 * M, lanes), lambda i, p_s: (0, 0)),            # params (resident)
                pl.BlockSpec((C + 1, lanes, out_w), lambda i, p_s: (0, 0, 0)),  # selectors (resident)
            ],
            out_specs=pl.BlockSpec((tile_rows, out_w), lambda i, p_s: (i, 0)),
        ),
        compiler_params=pltpu.CompilerParams(
            dimension_semantics=("parallel",),      # shard batch tiles over v7x's 2 TCs
        ),
    )(p, z_pk, params, sel)

    # Unpack: column f*C + c of packed row r is batch row r*fold + f, class c.
    lp_weighted = out_pk[:, :fold * C].reshape(rows_pad * fold, C)[:N]
    return z, lp_weighted


def _reference(z, means, log_stds, weights):
    """Pure-JAX mirror of the PyTorch forward (per-dim mixture, sum_dims=True, reduce='sum')."""
    z = z.astype(jnp.float32)
    lp = (-log_stds[None, :, :] - _HALF_LOG_2PI
          - 0.5 * ((z[:, None, :] - means[None, :, :]) * jnp.exp(-log_stds)[None, :, :]) ** 2)
    wmax = jnp.max(weights, axis=1, keepdims=True)
    ws = weights - wmax
    log_w = ws - jnp.log(jnp.sum(jnp.exp(ws), axis=1, keepdims=True))    # (C, M)
    v = lp[:, None, :, :] + log_w[None, :, :, None]                      # (N, C, M, D)
    vmax = jnp.max(v, axis=2, keepdims=True)
    lse = jnp.squeeze(vmax, 2) + jnp.log(jnp.sum(jnp.exp(v - vmax), axis=2))  # (N, C, D)
    return jnp.sum(lse, axis=-1)                                         # (N, C)


if __name__ == "__main__":
    # Module config (small, consistent with __init__ shapes):
    n_classes, n_mixes, n_dims = 4, 8, 32
    init_std = 0.1
    N = 203  # deliberately not a multiple of fold*strip to exercise the padding path

    key = jax.random.PRNGKey(0)
    k_mean, k_lstd, k_w, k_z = jax.random.split(key, 4)

    class_means = init_std * jax.random.normal(k_mean, (n_mixes, n_dims), dtype=jnp.float32)
    class_log_stds = init_std * jax.random.normal(k_lstd, (n_mixes, n_dims), dtype=jnp.float32)
    # weights is nn.Parameter(zeros) at init; use small random values so the
    # class-weighted path is exercised non-trivially.
    weights = 0.5 * jax.random.normal(k_w, (n_classes, n_mixes), dtype=jnp.float32)

    z = jax.random.normal(k_z, (N, n_dims), dtype=jnp.float32)

    z_out, lp_weighted = class_weighted_per_dim_gaussian_mixture(
        z, class_means, class_log_stds, weights)
    jax.block_until_ready(lp_weighted)

    ref = _reference(z, class_means, class_log_stds, weights)
    assert lp_weighted.shape == (N, n_classes)
    max_err = jnp.max(jnp.abs(lp_weighted - ref))
    assert jnp.allclose(lp_weighted, ref, atol=1e-3, rtol=1e-4), f"max abs err {max_err}"
    assert jnp.array_equal(z_out, z)

    print("KERNEL_OK")
</pallas_src>

<mosaic_0001>
module attributes {stable_mosaic.version = 11 : i64} {
  func.func @_cwpdgm_kernel(%arg0: i32, %arg1: memref<4x8xf32, #tpu.memory_space<smem>>, %arg2: memref<32x128xf32, #tpu.memory_space<vmem>>, %arg3: memref<24x128xf32, #tpu.memory_space<vmem>>, %arg4: memref<5x128x128xf32, #tpu.memory_space<vmem>>, %arg5: memref<32x128xf32, #tpu.memory_space<vmem>>) attributes {dimension_semantics = [#tpu.dimension_semantics<parallel>], iteration_bounds = array<i64: 2>, scalar_prefetch = 1 : i64, scratch_operands = 0 : i64, tpu.core_type = #tpu.core_type<tc>, window_params = [{transform_indices = @transform_0, window_bounds = array<i64: 32, 128>}, {pipeline_mode = #tpu.pipeline_mode<synchronous>, transform_indices = @transform_1, window_bounds = array<i64: 24, 128>}, {pipeline_mode = #tpu.pipeline_mode<synchronous>, transform_indices = @transform_2, window_bounds = array<i64: 5, 128, 128>}, {transform_indices = @transform_3, window_bounds = array<i64: 32, 128>}]} {
    %c0_i32 = arith.constant 0 : i32
    %c1_i32 = arith.constant 1 : i32
    %0 = arith.muli %c0_i32, %c1_i32 : i32
    %c0_i32_0 = arith.constant 0 : i32
    %1 = arith.addi %c0_i32_0, %0 : i32
    %c32_i32 = arith.constant 32 : i32
    %2 = arith.muli %1, %c32_i32 : i32
    %3 = tpu.assume_multiple %2, 32 : i32
    %4 = arith.index_cast %3 : i32 to index
    %c0 = arith.constant 0 : index
    %5 = vector.load %arg2[%4, %c0] : memref<32x128xf32, #tpu.memory_space<vmem>>, vector<32x128xf32>
    %c0_1 = arith.constant 0 : index
    %c0_2 = arith.constant 0 : index
    %6 = vector.load %arg3[%c0_1, %c0_2] : memref<24x128xf32, #tpu.memory_space<vmem>>, vector<1x128xf32>
    %c8 = arith.constant 8 : index
    %c0_3 = arith.constant 0 : index
    %7 = vector.load %arg3[%c8, %c0_3] : memref<24x128xf32, #tpu.memory_space<vmem>>, vector<1x128xf32>
    %c16 = arith.constant 16 : index
    %c0_4 = arith.constant 0 : index
    %8 = vector.load %arg3[%c16, %c0_4] : memref<24x128xf32, #tpu.memory_space<vmem>>, vector<1x128xf32>
    %9 = vector.broadcast %6 : vector<1x128xf32> to vector<32x128xf32>
    %10 = arith.mulf %5, %9 : vector<32x128xf32>
    %11 = vector.broadcast %7 : vector<1x128xf32> to vector<32x128xf32>
    %12 = arith.subf %10, %11 : vector<32x128xf32>
    %13 = arith.mulf %12, %12 : vector<32x128xf32>
    %14 = vector.broadcast %8 : vector<1x128xf32> to vector<32x128xf32>
    %15 = arith.subf %14, %13 : vector<32x128xf32>
    %c1 = arith.constant 1 : index
    %c0_5 = arith.constant 0 : index
    %16 = vector.load %arg3[%c1, %c0_5] : memref<24x128xf32, #tpu.memory_space<vmem>>, vector<1x128xf32>
    %c9 = arith.constant 9 : index
    %c0_6 = arith.constant 0 : index
    %17 = vector.load %arg3[%c9, %c0_6] : memref<24x128xf32, #tpu.memory_space<vmem>>, vector<1x128xf32>
    %c17 = arith.constant 17 : index
    %c0_7 = arith.constant 0 : index
    %18 = vector.load %arg3[%c17, %c0_7] : memref<24x128xf32, #tpu.memory_space<vmem>>, vector<1x128xf32>
    %19 = vector.broadcast %16 : vector<1x128xf32> to vector<32x128xf32>
    %20 = arith.mulf %5, %19 : vector<32x128xf32>
    %21 = vector.broadcast %17 : vector<1x128xf32> to vector<32x128xf32>
    %22 = arith.subf %20, %21 : vector<32x128xf32>
    %23 = arith.mulf %22, %22 : vector<32x128xf32>
    %24 = vector.broadcast %18 : vector<1x128xf32> to vector<32x128xf32>
    %25 = arith.subf %24, %23 : vector<32x128xf32>
    %c2 = arith.constant 2 : index
    %c0_8 = arith.constant 0 : index
    %26 = vector.load %arg3[%c2, %c0_8] : memref<24x128xf32, #tpu.memory_space<vmem>>, vector<1x128xf32>
    %c10 = arith.constant 10 : index
    %c0_9 = arith.constant 0 : index
    %27 = vector.load %arg3[%c10, %c0_9] : memref<24x128xf32, #tpu.memory_space<vmem>>, vector<1x128xf32>
    %c18 = arith.constant 18 : index
    %c0_10 = arith.constant 0 : index
    %28 = vector.load %arg3[%c18, %c0_10] : memref<24x128xf32, #tpu.memory_space<vmem>>, vector<1x128xf32>
    %29 = vector.broadcast %26 : vector<1x128xf32> to vector<32x128xf32>
    %30 = arith.mulf %5, %29 : vector<32x128xf32>
    %31 = vector.broadcast %27 : vector<1x128xf32> to vector<32x128xf32>
    %32 = arith.subf %30, %31 : vector<32x128xf32>
    %33 = arith.mulf %32, %32 : vector<32x128xf32>
    %34 = vector.broadcast %28 : vector<1x128xf32> to vector<32x128xf32>
    %35 = arith.subf %34, %33 : vector<32x128xf32>
    %c3 = arith.constant 3 : index
    %c0_11 = arith.constant 0 : index
    %36 = vector.load %arg3[%c3, %c0_11] : memref<24x128xf32, #tpu.memory_space<vmem>>, vector<1x128xf32>
    %c11 = arith.constant 11 : index
    %c0_12 = arith.constant 0 : index
    %37 = vector.load %arg3[%c11, %c0_12] : memref<24x128xf32, #tpu.memory_space<vmem>>, vector<1x128xf32>
    %c19 = arith.constant 19 : index
    %c0_13 = arith.constant 0 : index
    %38 = vector.load %arg3[%c19, %c0_13] : memref<24x128xf32, #tpu.memory_space<vmem>>, vector<1x128xf32>
    %39 = vector.broadcast %36 : vector<1x128xf32> to vector<32x128xf32>
    %40 = arith.mulf %5, %39 : vector<32x128xf32>
    %41 = vector.broadcast %37 : vector<1x128xf32> to vector<32x128xf32>
    %42 = arith.subf %40, %41 : vector<32x128xf32>
    %43 = arith.mulf %42, %42 : vector<32x128xf32>
    %44 = vector.broadcast %38 : vector<1x128xf32> to vector<32x128xf32>
    %45 = arith.subf %44, %43 : vector<32x128xf32>
    %c4 = arith.constant 4 : index
    %c0_14 = arith.constant 0 : index
    %46 = vector.load %arg3[%c4, %c0_14] : memref<24x128xf32, #tpu.memory_space<vmem>>, vector<1x128xf32>
    %c12 = arith.constant 12 : index
    %c0_15 = arith.constant 0 : index
    %47 = vector.load %arg3[%c12, %c0_15] : memref<24x128xf32, #tpu.memory_space<vmem>>, vector<1x128xf32>
    %c20 = arith.constant 20 : index
    %c0_16 = arith.constant 0 : index
    %48 = vector.load %arg3[%c20, %c0_16] : memref<24x128xf32, #tpu.memory_space<vmem>>, vector<1x128xf32>
    %49 = vector.broadcast %46 : vector<1x128xf32> to vector<32x128xf32>
    %50 = arith.mulf %5, %49 : vector<32x128xf32>
    %51 = vector.broadcast %47 : vector<1x128xf32> to vector<32x128xf32>
    %52 = arith.subf %50, %51 : vector<32x128xf32>
    %53 = arith.mulf %52, %52 : vector<32x128xf32>
    %54 = vector.broadcast %48 : vector<1x128xf32> to vector<32x128xf32>
    %55 = arith.subf %54, %53 : vector<32x128xf32>
    %c5 = arith.constant 5 : index
    %c0_17 = arith.constant 0 : index
    %56 = vector.load %arg3[%c5, %c0_17] : memref<24x128xf32, #tpu.memory_space<vmem>>, vector<1x128xf32>
    %c13 = arith.constant 13 : index
    %c0_18 = arith.constant 0 : index
    %57 = vector.load %arg3[%c13, %c0_18] : memref<24x128xf32, #tpu.memory_space<vmem>>, vector<1x128xf32>
    %c21 = arith.constant 21 : index
    %c0_19 = arith.constant 0 : index
    %58 = vector.load %arg3[%c21, %c0_19] : memref<24x128xf32, #tpu.memory_space<vmem>>, vector<1x128xf32>
    %59 = vector.broadcast %56 : vector<1x128xf32> to vector<32x128xf32>
    %60 = arith.mulf %5, %59 : vector<32x128xf32>
    %61 = vector.broadcast %57 : vector<1x128xf32> to vector<32x128xf32>
    %62 = arith.subf %60, %61 : vector<32x128xf32>
    %63 = arith.mulf %62, %62 : vector<32x128xf32>
    %64 = vector.broadcast %58 : vector<1x128xf32> to vector<32x128xf32>
    %65 = arith.subf %64, %63 : vector<32x128xf32>
    %c6 = arith.constant 6 : index
    %c0_20 = arith.constant 0 : index
    %66 = vector.load %arg3[%c6, %c0_20] : memref<24x128xf32, #tpu.memory_space<vmem>>, vector<1x128xf32>
    %c14 = arith.constant 14 : index
    %c0_21 = arith.constant 0 : index
    %67 = vector.load %arg3[%c14, %c0_21] : memref<24x128xf32, #tpu.memory_space<vmem>>, vector<1x128xf32>
    %c22 = arith.constant 22 : index
    %c0_22 = arith.constant 0 : index
    %68 = vector.load %arg3[%c22, %c0_22] : memref<24x128xf32, #tpu.memory_space<vmem>>, vector<1x128xf32>
    %69 = vector.broadcast %66 : vector<1x128xf32> to vector<32x128xf32>
    %70 = arith.mulf %5, %69 : vector<32x128xf32>
    %71 = vector.broadcast %67 : vector<1x128xf32> to vector<32x128xf32>
    %72 = arith.subf %70, %71 : vector<32x128xf32>
    %73 = arith.mulf %72, %72 : vector<32x128xf32>
    %74 = vector.broadcast %68 : vector<1x128xf32> to vector<32x128xf32>
    %75 = arith.subf %74, %73 : vector<32x128xf32>
    %c7 = arith.constant 7 : index
    %c0_23 = arith.constant 0 : index
    %76 = vector.load %arg3[%c7, %c0_23] : memref<24x128xf32, #tpu.memory_space<vmem>>, vector<1x128xf32>
    %c15 = arith.constant 15 : index
    %c0_24 = arith.constant 0 : index
    %77 = vector.load %arg3[%c15, %c0_24] : memref<24x128xf32, #tpu.memory_space<vmem>>, vector<1x128xf32>
    %c23 = arith.constant 23 : index
    %c0_25 = arith.constant 0 : index
    %78 = vector.load %arg3[%c23, %c0_25] : memref<24x128xf32, #tpu.memory_space<vmem>>, vector<1x128xf32>
    %79 = vector.broadcast %76 : vector<1x128xf32> to vector<32x128xf32>
    %80 = arith.mulf %5, %79 : vector<32x128xf32>
    %81 = vector.broadcast %77 : vector<1x128xf32> to vector<32x128xf32>
    %82 = arith.subf %80, %81 : vector<32x128xf32>
    %83 = arith.mulf %82, %82 : vector<32x128xf32>
    %84 = vector.broadcast %78 : vector<1x128xf32> to vector<32x128xf32>
    %85 = arith.subf %84, %83 : vector<32x128xf32>
    %86 = arith.maximumf %15, %25 : vector<32x128xf32>
    %87 = arith.maximumf %86, %35 : vector<32x128xf32>
    %88 = arith.maximumf %87, %45 : vector<32x128xf32>
    %89 = arith.maximumf %88, %55 : vector<32x128xf32>
    %90 = arith.maximumf %89, %65 : vector<32x128xf32>
    %91 = arith.maximumf %90, %75 : vector<32x128xf32>
    %92 = arith.maximumf %91, %85 : vector<32x128xf32>
    %93 = arith.subf %15, %92 : vector<32x128xf32>
    %94 = math.exp %93 : vector<32x128xf32>
    %c0_26 = arith.constant 0 : index
    %c0_27 = arith.constant 0 : index
    %95 = memref.load %arg1[%c0_26, %c0_27] : memref<4x8xf32, #tpu.memory_space<smem>>
    %96 = vector.broadcast %95 : f32 to vector<32x128xf32>
    %97 = arith.mulf %96, %94 : vector<32x128xf32>
    %c1_28 = arith.constant 1 : index
    %c0_29 = arith.constant 0 : index
    %98 = memref.load %arg1[%c1_28, %c0_29] : memref<4x8xf32, #tpu.memory_space<smem>>
    %99 = vector.broadcast %98 : f32 to vector<32x128xf32>
    %100 = arith.mulf %99, %94 : vector<32x128xf32>
    %c2_30 = arith.constant 2 : index
    %c0_31 = arith.constant 0 : index
    %101 = memref.load %arg1[%c2_30, %c0_31] : memref<4x8xf32, #tpu.memory_space<smem>>
    %102 = vector.broadcast %101 : f32 to vector<32x128xf32>
    %103 = arith.mulf %102, %94 : vector<32x128xf32>
    %c3_32 = arith.constant 3 : index
    %c0_33 = arith.constant 0 : index
    %104 = memref.load %arg1[%c3_32, %c0_33] : memref<4x8xf32, #tpu.memory_space<smem>>
    %105 = vector.broadcast %104 : f32 to vector<32x128xf32>
    %106 = arith.mulf %105, %94 : vector<32x128xf32>
    %107 = arith.subf %25, %92 : vector<32x128xf32>
    %108 = math.exp %107 : vector<32x128xf32>
    %c0_34 = arith.constant 0 : index
    %c1_35 = arith.constant 1 : index
    %109 = memref.load %arg1[%c0_34, %c1_35] : memref<4x8xf32, #tpu.memory_space<smem>>
    %110 = vector.broadcast %109 : f32 to vector<32x128xf32>
    %111 = arith.mulf %110, %108 : vector<32x128xf32>
    %112 = arith.addf %97, %111 : vector<32x128xf32>
    %c1_36 = arith.constant 1 : index
    %c1_37 = arith.constant 1 : index
    %113 = memref.load %arg1[%c1_36, %c1_37] : memref<4x8xf32, #tpu.memory_space<smem>>
    %114 = vector.broadcast %113 : f32 to vector<32x128xf32>
    %115 = arith.mulf %114, %108 : vector<32x128xf32>
    %116 = arith.addf %100, %115 : vector<32x128xf32>
    %c2_38 = arith.constant 2 : index
    %c1_39 = arith.constant 1 : index
    %117 = memref.load %arg1[%c2_38, %c1_39] : memref<4x8xf32, #tpu.memory_space<smem>>
    %118 = vector.broadcast %117 : f32 to vector<32x128xf32>
    %119 = arith.mulf %118, %108 : vector<32x128xf32>
    %120 = arith.addf %103, %119 : vector<32x128xf32>
    %c3_40 = arith.constant 3 : index
    %c1_41 = arith.constant 1 : index
    %121 = memref.load %arg1[%c3_40, %c1_41] : memref<4x8xf32, #tpu.memory_space<smem>>
    %122 = vector.broadcast %121 : f32 to vector<32x128xf32>
    %123 = arith.mulf %122, %108 : vector<32x128xf32>
    %124 = arith.addf %106, %123 : vector<32x128xf32>
    %125 = arith.subf %35, %92 : vector<32x128xf32>
    %126 = math.exp %125 : vector<32x128xf32>
    %c0_42 = arith.constant 0 : index
    %c2_43 = arith.constant 2 : index
    %127 = memref.load %arg1[%c0_42, %c2_43] : memref<4x8xf32, #tpu.memory_space<smem>>
    %128 = vector.broadcast %127 : f32 to vector<32x128xf32>
    %129 = arith.mulf %128, %126 : vector<32x128xf32>
    %130 = arith.addf %112, %129 : vector<32x128xf32>
    %c1_44 = arith.constant 1 : index
    %c2_45 = arith.constant 2 : index
    %131 = memref.load %arg1[%c1_44, %c2_45] : memref<4x8xf32, #tpu.memory_space<smem>>
    %132 = vector.broadcast %131 : f32 to vector<32x128xf32>
    %133 = arith.mulf %132, %126 : vector<32x128xf32>
    %134 = arith.addf %116, %133 : vector<32x128xf32>
    %c2_46 = arith.constant 2 : index
    %c2_47 = arith.constant 2 : index
    %135 = memref.load %arg1[%c2_46, %c2_47] : memref<4x8xf32, #tpu.memory_space<smem>>
    %136 = vector.broadcast %135 : f32 to vector<32x128xf32>
    %137 = arith.mulf %136, %126 : vector<32x128xf32>
    %138 = arith.addf %120, %137 : vector<32x128xf32>
    %c3_48 = arith.constant 3 : index
    %c2_49 = arith.constant 2 : index
    %139 = memref.load %arg1[%c3_48, %c2_49] : memref<4x8xf32, #tpu.memory_space<smem>>
    %140 = vector.broadcast %139 : f32 to vector<32x128xf32>
    %141 = arith.mulf %140, %126 : vector<32x128xf32>
    %142 = arith.addf %124, %141 : vector<32x128xf32>
    %143 = arith.subf %45, %92 : vector<32x128xf32>
    %144 = math.exp %143 : vector<32x128xf32>
    %c0_50 = arith.constant 0 : index
    %c3_51 = arith.constant 3 : index
    %145 = memref.load %arg1[%c0_50, %c3_51] : memref<4x8xf32, #tpu.memory_space<smem>>
    %146 = vector.broadcast %145 : f32 to vector<32x128xf32>
    %147 = arith.mulf %146, %144 : vector<32x128xf32>
    %148 = arith.addf %130, %147 : vector<32x128xf32>
    %c1_52 = arith.constant 1 : index
    %c3_53 = arith.constant 3 : index
    %149 = memref.load %arg1[%c1_52, %c3_53] : memref<4x8xf32, #tpu.memory_space<smem>>
    %150 = vector.broadcast %149 : f32 to vector<32x128xf32>
    %151 = arith.mulf %150, %144 : vector<32x128xf32>
    %152 = arith.addf %134, %151 : vector<32x128xf32>
    %c2_54 = arith.constant 2 : index
    %c3_55 = arith.constant 3 : index
    %153 = memref.load %arg1[%c2_54, %c3_55] : memref<4x8xf32, #tpu.memory_space<smem>>
    %154 = vector.broadcast %153 : f32 to vector<32x128xf32>
    %155 = arith.mulf %154, %144 : vector<32x128xf32>
    %156 = arith.addf %138, %155 : vector<32x128xf32>
    %c3_56 = arith.constant 3 : index
    %c3_57 = arith.constant 3 : index
    %157 = memref.load %arg1[%c3_56, %c3_57] : memref<4x8xf32, #tpu.memory_space<smem>>
    %158 = vector.broadcast %157 : f32 to vector<32x128xf32>
    %159 = arith.mulf %158, %144 : vector<32x128xf32>
    %160 = arith.addf %142, %159 : vector<32x128xf32>
    %161 = arith.subf %55, %92 : vector<32x128xf32>
    %162 = math.exp %161 : vector<32x128xf32>
    %c0_58 = arith.constant 0 : index
    %c4_59 = arith.constant 4 : index
    %163 = memref.load %arg1[%c0_58, %c4_59] : memref<4x8xf32, #tpu.memory_space<smem>>
    %164 = vector.broadcast %163 : f32 to vector<32x128xf32>
    %165 = arith.mulf %164, %162 : vector<32x128xf32>
    %166 = arith.addf %148, %165 : vector<32x128xf32>
    %c1_60 = arith.constant 1 : index
    %c4_61 = arith.constant 4 : index
    %167 = memref.load %arg1[%c1_60, %c4_61] : memref<4x8xf32, #tpu.memory_space<smem>>
    %168 = vector.broadcast %167 : f32 to vector<32x128xf32>
    %169 = arith.mulf %168, %162 : vector<32x128xf32>
    %170 = arith.addf %152, %169 : vector<32x128xf32>
    %c2_62 = arith.constant 2 : index
    %c4_63 = arith.constant 4 : index
    %171 = memref.load %arg1[%c2_62, %c4_63] : memref<4x8xf32, #tpu.memory_space<smem>>
    %172 = vector.broadcast %171 : f32 to vector<32x128xf32>
    %173 = arith.mulf %172, %162 : vector<32x128xf32>
    %174 = arith.addf %156, %173 : vector<32x128xf32>
    %c3_64 = arith.constant 3 : index
    %c4_65 = arith.constant 4 : index
    %175 = memref.load %arg1[%c3_64, %c4_65] : memref<4x8xf32, #tpu.memory_space<smem>>
    %176 = vector.broadcast %175 : f32 to vector<32x128xf32>
    %177 = arith.mulf %176, %162 : vector<32x128xf32>
    %178 = arith.addf %160, %177 : vector<32x128xf32>
    %179 = arith.subf %65, %92 : vector<32x128xf32>
    %180 = math.exp %179 : vector<32x128xf32>
    %c0_66 = arith.constant 0 : index
    %c5_67 = arith.constant 5 : index
    %181 = memref.load %arg1[%c0_66, %c5_67] : memref<4x8xf32, #tpu.memory_space<smem>>
    %182 = vector.broadcast %181 : f32 to vector<32x128xf32>
    %183 = arith.mulf %182, %180 : vector<32x128xf32>
    %184 = arith.addf %166, %183 : vector<32x128xf32>
    %c1_68 = arith.constant 1 : index
    %c5_69 = arith.constant 5 : index
    %185 = memref.load %arg1[%c1_68, %c5_69] : memref<4x8xf32, #tpu.memory_space<smem>>
    %186 = vector.broadcast %185 : f32 to vector<32x128xf32>
    %187 = arith.mulf %186, %180 : vector<32x128xf32>
    %188 = arith.addf %170, %187 : vector<32x128xf32>
    %c2_70 = arith.constant 2 : index
    %c5_71 = arith.constant 5 : index
    %189 = memref.load %arg1[%c2_70, %c5_71] : memref<4x8xf32, #tpu.memory_space<smem>>
    %190 = vector.broadcast %189 : f32 to vector<32x128xf32>
    %191 = arith.mulf %190, %180 : vector<32x128xf32>
    %192 = arith.addf %174, %191 : vector<32x128xf32>
    %c3_72 = arith.constant 3 : index
    %c5_73 = arith.constant 5 : index
    %193 = memref.load %arg1[%c3_72, %c5_73] : memref<4x8xf32, #tpu.memory_space<smem>>
    %194 = vector.broadcast %193 : f32 to vector<32x128xf32>
    %195 = arith.mulf %194, %180 : vector<32x128xf32>
    %196 = arith.addf %178, %195 : vector<32x128xf32>
    %197 = arith.subf %75, %92 : vector<32x128xf32>
    %198 = math.exp %197 : vector<32x128xf32>
    %c0_74 = arith.constant 0 : index
    %c6_75 = arith.constant 6 : index
    %199 = memref.load %arg1[%c0_74, %c6_75] : memref<4x8xf32, #tpu.memory_space<smem>>
    %200 = vector.broadcast %199 : f32 to vector<32x128xf32>
    %201 = arith.mulf %200, %198 : vector<32x128xf32>
    %202 = arith.addf %184, %201 : vector<32x128xf32>
    %c1_76 = arith.constant 1 : index
    %c6_77 = arith.constant 6 : index
    %203 = memref.load %arg1[%c1_76, %c6_77] : memref<4x8xf32, #tpu.memory_space<smem>>
    %204 = vector.broadcast %203 : f32 to vector<32x128xf32>
    %205 = arith.mulf %204, %198 : vector<32x128xf32>
    %206 = arith.addf %188, %205 : vector<32x128xf32>
    %c2_78 = arith.constant 2 : index
    %c6_79 = arith.constant 6 : index
    %207 = memref.load %arg1[%c2_78, %c6_79] : memref<4x8xf32, #tpu.memory_space<smem>>
    %208 = vector.broadcast %207 : f32 to vector<32x128xf32>
    %209 = arith.mulf %208, %198 : vector<32x128xf32>
    %210 = arith.addf %192, %209 : vector<32x128xf32>
    %c3_80 = arith.constant 3 : index
    %c6_81 = arith.constant 6 : index
    %211 = memref.load %arg1[%c3_80, %c6_81] : memref<4x8xf32, #tpu.memory_space<smem>>
    %212 = vector.broadcast %211 : f32 to vector<32x128xf32>
    %213 = arith.mulf %212, %198 : vector<32x128xf32>
    %214 = arith.addf %196, %213 : vector<32x128xf32>
    %215 = arith.subf %85, %92 : vector<32x128xf32>
    %216 = math.exp %215 : vector<32x128xf32>
    %c0_82 = arith.constant 0 : index
    %c7_83 = arith.constant 7 : index
    %217 = memref.load %arg1[%c0_82, %c7_83] : memref<4x8xf32, #tpu.memory_space<smem>>
    %218 = vector.broadcast %217 : f32 to vector<32x128xf32>
    %219 = arith.mulf %218, %216 : vector<32x128xf32>
    %220 = arith.addf %202, %219 : vector<32x128xf32>
    %c1_84 = arith.constant 1 : index
    %c7_85 = arith.constant 7 : index
    %221 = memref.load %arg1[%c1_84, %c7_85] : memref<4x8xf32, #tpu.memory_space<smem>>
    %222 = vector.broadcast %221 : f32 to vector<32x128xf32>
    %223 = arith.mulf %222, %216 : vector<32x128xf32>
    %224 = arith.addf %206, %223 : vector<32x128xf32>
    %c2_86 = arith.constant 2 : index
    %c7_87 = arith.constant 7 : index
    %225 = memref.load %arg1[%c2_86, %c7_87] : memref<4x8xf32, #tpu.memory_space<smem>>
    %226 = vector.broadcast %225 : f32 to vector<32x128xf32>
    %227 = arith.mulf %226, %216 : vector<32x128xf32>
    %228 = arith.addf %210, %227 : vector<32x128xf32>
    %c3_88 = arith.constant 3 : index
    %c7_89 = arith.constant 7 : index
    %229 = memref.load %arg1[%c3_88, %c7_89] : memref<4x8xf32, #tpu.memory_space<smem>>
    %230 = vector.broadcast %229 : f32 to vector<32x128xf32>
    %231 = arith.mulf %230, %216 : vector<32x128xf32>
    %232 = arith.addf %214, %231 : vector<32x128xf32>
    %c0_90 = arith.constant 0 : index
    %c0_91 = arith.constant 0 : index
    %c0_92 = arith.constant 0 : index
    %233 = vector.load %arg4[%c0_90, %c0_91, %c0_92] : memref<5x128x128xf32, #tpu.memory_space<vmem>>, vector<1x128x128xf32>
    %234 = vector.shape_cast %233 : vector<1x128x128xf32> to vector<128x128xf32>
    %cst = arith.constant dense<0.000000e+00> : vector<32x128xf32>
    %235 = tpu.matmul %92, %234, %cst {dimension_numbers = #tpu.dot_dimension_numbers<[1], [0], [0], [1], [0, 0, 1, 1], [], []>} : vector<32x128xf32>, vector<128x128xf32>, vector<32x128xf32> -> vector<32x128xf32>
    %236 = math.log %220 : vector<32x128xf32>
    %c1_93 = arith.constant 1 : index
    %c0_94 = arith.constant 0 : index
    %c0_95 = arith.constant 0 : index
    %237 = vector.load %arg4[%c1_93, %c0_94, %c0_95] : memref<5x128x128xf32, #tpu.memory_space<vmem>>, vector<1x128x128xf32>
    %238 = vector.shape_cast %237 : vector<1x128x128xf32> to vector<128x128xf32>
    %cst_96 = arith.constant dense<0.000000e+00> : vector<32x128xf32>
    %239 = tpu.matmul %236, %238, %cst_96 {dimension_numbers = #tpu.dot_dimension_numbers<[1], [0], [0], [1], [0, 0, 1, 1], [], []>} : vector<32x128xf32>, vector<128x128xf32>, vector<32x128xf32> -> vector<32x128xf32>
    %240 = arith.addf %235, %239 : vector<32x128xf32>
    %241 = math.log %224 : vector<32x128xf32>
    %c2_97 = arith.constant 2 : index
    %c0_98 = arith.constant 0 : index
    %c0_99 = arith.constant 0 : index
    %242 = vector.load %arg4[%c2_97, %c0_98, %c0_99] : memref<5x128x128xf32, #tpu.memory_space<vmem>>, vector<1x128x128xf32>
    %243 = vector.shape_cast %242 : vector<1x128x128xf32> to vector<128x128xf32>
    %cst_100 = arith.constant dense<0.000000e+00> : vector<32x128xf32>
    %244 = tpu.matmul %241, %243, %cst_100 {dimension_numbers = #tpu.dot_dimension_numbers<[1], [0], [0], [1], [0, 0, 1, 1], [], []>} : vector<32x128xf32>, vector<128x128xf32>, vector<32x128xf32> -> vector<32x128xf32>
    %245 = arith.addf %240, %244 : vector<32x128xf32>
    %246 = math.log %228 : vector<32x128xf32>
    %c3_101 = arith.constant 3 : index
    %c0_102 = arith.constant 0 : index
    %c0_103 = arith.constant 0 : index
    %247 = vector.load %arg4[%c3_101, %c0_102, %c0_103] : memref<5x128x128xf32, #tpu.memory_space<vmem>>, vector<1x128x128xf32>
    %248 = vector.shape_cast %247 : vector<1x128x128xf32> to vector<128x128xf32>
    %cst_104 = arith.constant dense<0.000000e+00> : vector<32x128xf32>
    %249 = tpu.matmul %246, %248, %cst_104 {dimension_numbers = #tpu.dot_dimension_numbers<[1], [0], [0], [1], [0, 0, 1, 1], [], []>} : vector<32x128xf32>, vector<128x128xf32>, vector<32x128xf32> -> vector<32x128xf32>
    %250 = arith.addf %245, %249 : vector<32x128xf32>
    %251 = math.log %232 : vector<32x128xf32>
    %c4_105 = arith.constant 4 : index
    %c0_106 = arith.constant 0 : index
    %c0_107 = arith.constant 0 : index
    %252 = vector.load %arg4[%c4_105, %c0_106, %c0_107] : memref<5x128x128xf32, #tpu.memory_space<vmem>>, vector<1x128x128xf32>
    %253 = vector.shape_cast %252 : vector<1x128x128xf32> to vector<128x128xf32>
    %cst_108 = arith.constant dense<0.000000e+00> : vector<32x128xf32>
    %254 = tpu.matmul %251, %253, %cst_108 {dimension_numbers = #tpu.dot_dimension_numbers<[1], [0], [0], [1], [0, 0, 1, 1], [], []>} : vector<32x128xf32>, vector<128x128xf32>, vector<32x128xf32> -> vector<32x128xf32>
    %255 = arith.addf %250, %254 : vector<32x128xf32>
    %256 = arith.index_cast %3 : i32 to index
    %c0_109 = arith.constant 0 : index
    %257 = vector.load %arg5[%256, %c0_109] : memref<32x128xf32, #tpu.memory_space<vmem>>, vector<32x128xf32>
    tpu.vector_store %arg5[%256, %c0_109], %255 {strides = array<i32>} : memref<32x128xf32, #tpu.memory_space<vmem>>, vector<32x128xf32>,
    %c1_i32_110 = arith.constant 1 : i32
    return
  }
  func.func @transform_0(%arg0: i32, %arg1: memref<4x8xf32, #tpu.memory_space<smem>>) -> (i32, i32) {
    %c0_i32 = arith.constant 0 : i32
    %c0_i32_0 = arith.constant 0 : i32
    return %arg0, %c0_i32 : i32, i32
  }
  func.func @transform_1(%arg0: i32, %arg1: memref<4x8xf32, #tpu.memory_space<smem>>) -> (i32, i32) {
    %c0_i32 = arith.constant 0 : i32
    %c0_i32_0 = arith.constant 0 : i32
    %c0_i32_1 = arith.constant 0 : i32
    return %c0_i32, %c0_i32_0 : i32, i32
  }
  func.func @transform_2(%arg0: i32, %arg1: memref<4x8xf32, #tpu.memory_space<smem>>) -> (i32, i32, i32) {
    %c0_i32 = arith.constant 0 : i32
    %c0_i32_0 = arith.constant 0 : i32
    %c0_i32_1 = arith.constant 0 : i32
    %c0_i32_2 = arith.constant 0 : i32
    return %c0_i32, %c0_i32_0, %c0_i32_1 : i32, i32, i32
  }
  func.func @transform_3(%arg0: i32, %arg1: memref<4x8xf32, #tpu.memory_space<smem>>) -> (i32, i32) {
    %c0_i32 = arith.constant 0 : i32
    %c0_i32_0 = arith.constant 0 : i32
    return %arg0, %c0_i32 : i32, i32
  }
}

</mosaic_0001>

<llo_original>
// kernel: tpu_custom_call.1
$region0: #{tpu_custom_call.1}
  #allocation0 [shape = 'u32[]', space=smem, size = 0x4, offset = 0x4, fixed_abs, tag = 'smem constant byte address 0x4 - core index']
  #allocation1 [shape = 'u32[144,128]{1,0:T(1,128)}', space=vmem, size = 0x12000, scoped, tag = 'internal scratch']
  #allocation2 [shape = 's32[1]{0}', space=sflag, size = 0x4, scoped, tag = 'scoped memory for tpu_custom_call.1']
  #allocation3 [shape = 'u8[2048]{0}', space=smem, size = 0x800, scoped, tag = 'prefetched SMEM operand 0']
  %s0 = inlined_call_operand.hbm [shape: f32[4,8], index: 0, kind: input, shape index: {}]
  %s1 = inlined_call_operand.hbm [shape: f32[64,128], index: 1, kind: input, shape index: {}]
  %s2 = inlined_call_operand.hbm [shape: f32[24,128], index: 2, kind: input, shape index: {}]
  %s3 = inlined_call_operand.hbm [shape: f32[5,128,128], index: 3, kind: input, shape index: {}]
  %s4 = inlined_call_operand.hbm [shape: f32[64,128], index: 4, kind: output, shape index: {}]
  %s5 = sld [smem:[#allocation0]]
  $region57: #{tpu_custom_call.1} parent=0
    _
  %s7 = ssub.s32 1, %s5
  %s8 = scalar_select 0, %s7, %s5
  %10 = dma.hbm_to_smem %s0, 64, [#allocation3], [#allocation2]
  %11 = dma.done [#allocation2], 64
  %12 = sfence
  $region1: #{tpu_custom_call.1} parent=0
    #allocation4 [shape = 'u8[32768]{0}', space=vmem, size = 0x8000, scoped, tag = 'input window, operand 1']
    #allocation5 [shape = 's32[2]{0}', space=sflag, size = 0x8, scoped, tag = 'scoped memory for tpu_custom_call.1']
    #allocation6 [shape = 's32[2]{0}', space=sflag, size = 0x8, scoped, tag = 'scoped memory for tpu_custom_call.1']
    #allocation7 [shape = 'u8[12288]{0}', space=vmem, size = 0x3000, scoped, tag = 'input window, operand 2, single buffered']
    #allocation8 [shape = 's32[1]{0}', space=sflag, size = 0x4, scoped, tag = 'scoped memory for tpu_custom_call.1']
    #allocation9 [shape = 'u8[327680]{0}', space=vmem, size = 0x50000, scoped, tag = 'input window, operand 3, single buffered']
    #allocation10 [shape = 'u8[32768]{0}', space=vmem, size = 0x8000, scoped, tag = 'output window, operand 0']
    %13 = vsyncpa [#allocation5], 0
    %s14 = scalar_lea.sflag [#allocation5], 1
    %15 = vsyncpa %s14, 0
    %16 = vsyncpa [#allocation8], 0
    %17 = vsyncpa [#allocation6], 0
    %s18 = scalar_lea.sflag [#allocation6], 1
    %19 = vsyncpa %s18, 0
    loop: start=0, step=1, limit=4
    $region2: #{tpu_custom_call.1} parent=1 // loop_pre_header
      _
    $region3: #{tpu_custom_call.1} parent=1 // loop_header
      %s21 = sphi 0, %s25
      %p22 = scmp.ge.s32.totalorder %s21, 4
      %s31 = sphi 0, %s33
      %s34 = sphi 0, %s31
      %s35 = sphi 0, %s34
      %s51 = sphi 0, %s35
      %s55 = sphi 0, %s55
      %s57 = sphi 0, %s55
      %s58 = sphi 0, %s57
      %s72 = sphi 0, %s58
      %s76 = sphi 0, %s76
      %s78 = sphi 0, %s76
      %s79 = sphi 0, %s78
      %s93 = sphi 0, %s79
      %s99 = sphi 0, %s101
      %s102 = sphi 0, %s99
      %s103 = sphi 0, %s102
      %s119 = sphi 0, %s103
    $region4: #{tpu_custom_call.1} parent=1 // loop_header_branch
      %24 = sbr.rel (%p22) target = $region8
    $region5: #{tpu_custom_call.1} parent=1 // loop_body
      %s26 = ssub.s32 %s21, 1
      %s27 = ssub.s32 %s21, 2
      %s28 = sadd.s32 %s21, 1
      %s29 = ssub.s32 %s21, %s28
      %p30 = scmp.eq.s32.totalorder %s29, 0
      %s32 = sadd.s32 %s31, 1
      %s33 = scalar_select %p30, %s31, %s32
      %p36 = pneg %p30
      %p37 = scmp.eq.s32.totalorder %s21, 1
      %p38 = por %p36, %p37
      %p39 = scmp.ne.s32.totalorder %s31, %s34
      %p40 = scmp.eq.s32.totalorder %s21, 0
      %p41 = por %p39, %p40
      %p42 = scmp.ne.s32.totalorder %s31, %s34
      %p43 = scmp.eq.s32.totalorder %s26, 1
      %p44 = por %p42, %p43
      %p45 = scmp.ne.s32.totalorder %s34, %s35
      %p46 = scmp.eq.s32.totalorder %s26, 0
      %p47 = por %p45, %p46
      %p48 = scmp.ne.s32.totalorder %s34, %s35
      %p49 = scmp.eq.s32.totalorder %s27, 1
      %p50 = por %p48, %p49
      %p52 = scmp.ne.s32.totalorder %s35, %s51
      %p53 = scmp.eq.s32.totalorder %s27, 0
      %p54 = por %p52, %p53
      %s56 = sadd.s32 %s55, 1
      %p59 = scmp.eq.s32.totalorder %s21, 1
      %p60 = scmp.ne.s32.totalorder %s55, %s57
      %p61 = scmp.eq.s32.totalorder %s21, 0
      %p62 = por %p60, %p61
      %p63 = scmp.ne.s32.totalorder %s55, %s57
      %p64 = scmp.eq.s32.totalorder %s26, 1
      %p65 = por %p63, %p64
      %p66 = scmp.ne.s32.totalorder %s57, %s58
      %p67 = scmp.eq.s32.totalorder %s26, 0
      %p68 = por %p66, %p67
      %p69 = scmp.ne.s32.totalorder %s57, %s58
      %p70 = scmp.eq.s32.totalorder %s27, 1
      %p71 = por %p69, %p70
      %p73 = scmp.ne.s32.totalorder %s58, %s72
      %p74 = scmp.eq.s32.totalorder %s27, 0
      %p75 = por %p73, %p74
      %s77 = sadd.s32 %s76, 1
      %p80 = scmp.eq.s32.totalorder %s21, 1
      %p81 = scmp.ne.s32.totalorder %s76, %s78
      %p82 = scmp.eq.s32.totalorder %s21, 0
      %p83 = por %p81, %p82
      %p84 = scmp.ne.s32.totalorder %s76, %s78
      %p85 = scmp.eq.s32.totalorder %s26, 1
      %p86 = por %p84, %p85
      %p87 = scmp.ne.s32.totalorder %s78, %s79
      %p88 = scmp.eq.s32.totalorder %s26, 0
      %p89 = por %p87, %p88
      %p90 = scmp.ne.s32.totalorder %s78, %s79
      %p91 = scmp.eq.s32.totalorder %s27, 1
      %p92 = por %p90, %p91
      %p94 = scmp.ne.s32.totalorder %s79, %s93
      %p95 = scmp.eq.s32.totalorder %s27, 0
      %p96 = por %p94, %p95
      %s97 = ssub.s32 %s21, %s28
      %p98 = scmp.eq.s32.totalorder %s97, 0
      %s100 = sadd.s32 %s99, 1
      %s101 = scalar_select %p98, %s99, %s100
      %p104 = pneg %p98
      %p105 = scmp.eq.s32.totalorder %s21, 1
      %p106 = por %p104, %p105
      %p107 = scmp.ne.s32.totalorder %s99, %s102
      %p108 = scmp.eq.s32.totalorder %s21, 0
      %p109 = por %p107, %p108
      %p110 = scmp.ne.s32.totalorder %s99, %s102
      %p111 = scmp.eq.s32.totalorder %s26, 1
      %p112 = por %p110, %p111
      %p113 = scmp.ne.s32.totalorder %s102, %s103
      %p114 = scmp.eq.s32.totalorder %s26, 0
      %p115 = por %p113, %p114
      %p116 = scmp.ne.s32.totalorder %s102, %s103
      %p117 = scmp.eq.s32.totalorder %s27, 1
      %p118 = por %p116, %p117
      %p120 = scmp.ne.s32.totalorder %s103, %s119
      %p121 = scmp.eq.s32.totalorder %s27, 0
      %p122 = por %p120, %p121
      %p123 = scmp.le.s32.totalorder 1, %s21
      %p124 = scmp.lt.s32.totalorder %s21, 3
      %p125 = pnand %p123, %p124
      %p126 = pneg %p125
      // Predicated region
      $region9: #{tpu_custom_call.1} parent=5 // pred_check
        _
      $region10: #{tpu_custom_call.1} parent=5 // pred_check_branch
        %128 = sbr.rel (%p125) target = $region12
      $region11: #{tpu_custom_call.1} parent=5 // pred_region
        %s129 = ssub.s32 %s21, 1
        // Predicated region
        $region13: #{tpu_custom_call.1} parent=11 // pred_check
          %p130 = pneg %p68
        $region14: #{tpu_custom_call.1} parent=11 // pred_check_branch
          %132 = sbr.rel (%p130) target = $region16
        $region15: #{tpu_custom_call.1} parent=11 // pred_region
          %s134 = ssub.s32 384, 384
          %135 = vsyncadd [#allocation8], %s134
          %s136 = sshll.u32 [#allocation7], 4
          %s137 = int_to_ptr.vmem [resolvable:$true] %s136
          %142 = dma.hbm_to_vmem [thread:$0]  %s2, 384, %s137, [#allocation8], 128, 128, 8
        $region16: #{tpu_custom_call.1} parent=11 // pred_fallthru
          _
        // Predicated region
        $region17: #{tpu_custom_call.1} parent=11 // pred_check
          %p143 = pneg %p89
        $region18: #{tpu_custom_call.1} parent=11 // pred_check_branch
          %145 = sbr.rel (%p143) target = $region20
        $region19: #{tpu_custom_call.1} parent=11 // pred_region
          %s147 = ssub.s32 10240, 10240
          %148 = vsyncadd [#allocation8], %s147
          %s149 = sshll.u32 [#allocation9], 4
          %s150 = int_to_ptr.vmem [resolvable:$true] %s149
          %155 = dma.hbm_to_vmem [thread:$0]  %s3, 10240, %s150, [#allocation8], 128, 128, 8
        $region20: #{tpu_custom_call.1} parent=11 // pred_fallthru
          _
      $region12: #{tpu_custom_call.1} parent=5 // pred_fallthru
        _
      %p156 = scmp.lt.s32.totalorder %s21, 2
      // Predicated region
      $region21: #{tpu_custom_call.1} parent=5 // pred_check
        %p157 = pneg %p156
      $region22: #{tpu_custom_call.1} parent=5 // pred_check_branch
        %159 = sbr.rel (%p157) target = $region24
      $region23: #{tpu_custom_call.1} parent=5 // pred_region
        // Predicated region
        $region25: #{tpu_custom_call.1} parent=23 // pred_check
          %p160 = pneg %p41
        $region26: #{tpu_custom_call.1} parent=23 // pred_check_branch
          %162 = sbr.rel (%p160) target = $region28
        $region27: #{tpu_custom_call.1} parent=23 // pred_region
          %s163 = sand.u32 %s31, 1
          %s164 = scalar_lea.sflag [#allocation5], %s163
          %s165 = sand.u32 %s31, 1
          %s166 = smul.addr %s165, 32
          %s167 = scalar_lea.vmem [#allocation4], %s166
          %s168 = smul.u32 4, %s21
          %s170 = ssub.s32 512, 512
          %171 = vsyncadd %s164, %s170
          %s172 = smul.addr %s168, 128
          %s173 = scalar_lea.hbm %s1, %s172
          %s174 = sshll.u32 %s167, 4
          %s175 = int_to_ptr.vmem [resolvable:$true] %s174
          %180 = dma.hbm_to_vmem [thread:$0]  %s173, 512, %s175, %s164, 128, 128, 8
        $region28: #{tpu_custom_call.1} parent=23 // pred_fallthru
          _
      $region24: #{tpu_custom_call.1} parent=5 // pred_fallthru
        _
      %p181 = scmp.le.s32.totalorder 1, %s21
      %p182 = scmp.lt.s32.totalorder %s21, 3
      %p183 = pnand %p181, %p182
      %p184 = pneg %p183
      // Predicated region
      $region29: #{tpu_custom_call.1} parent=5 // pred_check
        _
      $region30: #{tpu_custom_call.1} parent=5 // pred_check_branch
        %186 = sbr.rel (%p183) target = $region32
      $region31: #{tpu_custom_call.1} parent=5 // pred_region
        %s187 = ssub.s32 %s21, 1
        %s188 = sand.u32 %s34, 1
        %s189 = scalar_lea.sflag [#allocation5], %s188
        %s190 = sand.u32 %s34, 1
        %s191 = smul.addr %s190, 32
        %s192 = scalar_lea.vmem [#allocation4], %s191
        // Predicated region
        $region33: #{tpu_custom_call.1} parent=31 // pred_check
          %p193 = pneg %p47
        $region34: #{tpu_custom_call.1} parent=31 // pred_check_branch
          %195 = sbr.rel (%p193) target = $region36
        $region35: #{tpu_custom_call.1} parent=31 // pred_region
          %196 = dma.done %s189, 512
        $region36: #{tpu_custom_call.1} parent=31 // pred_fallthru
          _
        // Predicated region
        $region37: #{tpu_custom_call.1} parent=31 // pred_check
          %p197 = pneg %p68
        $region38: #{tpu_custom_call.1} parent=31 // pred_check_branch
          %199 = sbr.rel (%p197) target = $region40
        $region39: #{tpu_custom_call.1} parent=31 // pred_region
          %200 = dma.done [#allocation8], 384
        $region40: #{tpu_custom_call.1} parent=31 // pred_fallthru
          _
        // Predicated region
        $region41: #{tpu_custom_call.1} parent=31 // pred_check
          %p201 = pneg %p89
        $region42: #{tpu_custom_call.1} parent=31 // pred_check_branch
          %203 = sbr.rel (%p201) target = $region44
        $region43: #{tpu_custom_call.1} parent=31 // pred_region
          %204 = dma.done [#allocation8], 10240
        $region44: #{tpu_custom_call.1} parent=31 // pred_fallthru
          _
        %s205 = sand.u32 %s34, 1
        %s206 = scalar_lea.sflag [#allocation5], %s205
        %s207 = sand.u32 %s34, 1
        %s208 = smul.addr %s207, 32
        %s209 = scalar_lea.vmem [#allocation4], %s208
        %p210 = pneg %p47
        %p211 = pneg %p44
        %p212 = pneg %p68
        %p213 = pneg %p65
        %p214 = pneg %p89
        %p215 = pneg %p86
        %p216 = pneg %p115
        %p217 = pneg %p112
        %s218 = sand.u32 %s102, 1
        %s219 = scalar_lea.sflag [#allocation6], %s218
        %s220 = sand.u32 %s102, 1
        %s221 = smul.addr %s220, 32
        %s222 = scalar_lea.vmem [#allocation10], %s221
        %s223 = smul.u32 4, %s26
        %s224 = smul.u32 4, %s26
        %v225 = vld [vmem:[%s192] sm:$0xff]
        %v226 = vld [vmem:[%s192 + $0x8] sm:$0xff]
        %v227 = vld [vmem:[%s192 + $0x10] sm:$0xff]
        %v228 = vld [vmem:[%s192 + $0x18] sm:$0xff]
        %v229 = vld [vmem:[#allocation7] sm:$0x1]
        %v230 = vld [vmem:[#allocation7 + $0x8] sm:$0x1]
        %v231 = vld [vmem:[#allocation7 + $0x10] sm:$0x1]
        %v232 = vlaneseq
        %v233 = vshrl.u32 %v232, 7
        %v234 = vsub.s32 0, %v233
        %v235 = vrot.slane %v229, %v234
        %v236 = vmul.f32 %v225, %v235
        %v237 = vmul.f32 %v226, %v235
        %v238 = vmul.f32 %v227, %v235
        %v239 = vmul.f32 %v228, %v235
        %v240 = vlaneseq
        %v241 = vshrl.u32 %v240, 7
        %v242 = vsub.s32 0, %v241
        %v243 = vrot.slane %v230, %v242
        %v244 = vsub.f32 %v236, %v243
        %v245 = vsub.f32 %v237, %v243
        %v246 = vsub.f32 %v238, %v243
        %v247 = vsub.f32 %v239, %v243
        %v248 = vmul.f32 %v244, %v244
        %v249 = vmul.f32 %v245, %v245
        %v250 = vmul.f32 %v246, %v246
        %v251 = vmul.f32 %v247, %v247
        %v252 = vlaneseq
        %v253 = vshrl.u32 %v252, 7
        %v254 = vsub.s32 0, %v253
        %v255 = vrot.slane %v231, %v254
        %v256 = vsub.f32 %v255, %v248
        %v257 = vsub.f32 %v255, %v249
        %v258 = vsub.f32 %v255, %v250
        %v259 = vsub.f32 %v255, %v251
        %v260 = vld [vmem:[#allocation7 + $0x1] sm:$0x1]
        %v261 = vld [vmem:[#allocation7 + $0x9] sm:$0x1]
        %v262 = vld [vmem:[#allocation7 + $0x11] sm:$0x1]
        %v263 = vlaneseq
        %v264 = vshrl.u32 %v263, 7
        %v265 = vsub.s32 0, %v264
        %v266 = vrot.slane %v260, %v265
        %v267 = vmul.f32 %v225, %v266
        %v268 = vmul.f32 %v226, %v266
        %v269 = vmul.f32 %v227, %v266
        %v270 = vmul.f32 %v228, %v266
        %v271 = vlaneseq
        %v272 = vshrl.u32 %v271, 7
        %v273 = vsub.s32 0, %v272
        %v274 = vrot.slane %v261, %v273
        %v275 = vsub.f32 %v267, %v274
        %v276 = vsub.f32 %v268, %v274
        %v277 = vsub.f32 %v269, %v274
        %v278 = vsub.f32 %v270, %v274
        %v279 = vmul.f32 %v275, %v275
        %v280 = vmul.f32 %v276, %v276
        %v281 = vmul.f32 %v277, %v277
        %v282 = vmul.f32 %v278, %v278
        %v283 = vlaneseq
        %v284 = vshrl.u32 %v283, 7
        %v285 = vsub.s32 0, %v284
        %v286 = vrot.slane %v262, %v285
        %v287 = vsub.f32 %v286, %v279
        %v288 = vsub.f32 %v286, %v280
        %v289 = vsub.f32 %v286, %v281
        %v290 = vsub.f32 %v286, %v282
        %v291 = vld [vmem:[#allocation7 + $0x2] sm:$0x1]
        %v292 = vld [vmem:[#allocation7 + $0xa] sm:$0x1]
        %v293 = vld [vmem:[#allocation7 + $0x12] sm:$0x1]
        %v294 = vlaneseq
        %v295 = vshrl.u32 %v294, 7
        %v296 = vsub.s32 0, %v295
        %v297 = vrot.slane %v291, %v296
        %v298 = vmul.f32 %v225, %v297
        %v299 = vmul.f32 %v226, %v297
        %v300 = vmul.f32 %v227, %v297
        %v301 = vmul.f32 %v228, %v297
        %v302 = vlaneseq
        %v303 = vshrl.u32 %v302, 7
        %v304 = vsub.s32 0, %v303
        %v305 = vrot.slane %v292, %v304
        %v306 = vsub.f32 %v298, %v305
        %v307 = vsub.f32 %v299, %v305
        %v308 = vsub.f32 %v300, %v305
        %v309 = vsub.f32 %v301, %v305
        %v310 = vmul.f32 %v306, %v306
        %v311 = vmul.f32 %v307, %v307
        %v312 = vmul.f32 %v308, %v308
        %v313 = vmul.f32 %v309, %v309
        %v314 = vlaneseq
        %v315 = vshrl.u32 %v314, 7
        %v316 = vsub.s32 0, %v315
        %v317 = vrot.slane %v293, %v316
        %v318 = vsub.f32 %v317, %v310
        %v319 = vsub.f32 %v317, %v311
        %v320 = vsub.f32 %v317, %v312
        %v321 = vsub.f32 %v317, %v313
        %v322 = vld [vmem:[#allocation7 + $0x3] sm:$0x1]
        %v323 = vld [vmem:[#allocation7 + $0xb] sm:$0x1]
        %v324 = vld [vmem:[#allocation7 + $0x13] sm:$0x1]
        %v325 = vlaneseq
        %v326 = vshrl.u32 %v325, 7
        %v327 = vsub.s32 0, %v326
        %v328 = vrot.slane %v322, %v327
        %v329 = vmul.f32 %v225, %v328
        %v330 = vmul.f32 %v226, %v328
        %v331 = vmul.f32 %v227, %v328
        %v332 = vmul.f32 %v228, %v328
        %v333 = vlaneseq
        %v334 = vshrl.u32 %v333, 7
        %v335 = vsub.s32 0, %v334
        %v336 = vrot.slane %v323, %v335
        %v337 = vsub.f32 %v329, %v336
        %v338 = vsub.f32 %v330, %v336
        %v339 = vsub.f32 %v331, %v336
        %v340 = vsub.f32 %v332, %v336
        %v341 = vmul.f32 %v337, %v337
        %v342 = vmul.f32 %v338, %v338
        %v343 = vmul.f32 %v339, %v339
        %v344 = vmul.f32 %v340, %v340
        %v345 = vlaneseq
        %v346 = vshrl.u32 %v345, 7
        %v347 = vsub.s32 0, %v346
        %v348 = vrot.slane %v324, %v347
        %v349 = vsub.f32 %v348, %v341
        %v350 = vsub.f32 %v348, %v342
        %v351 = vsub.f32 %v348, %v343
        %v352 = vsub.f32 %v348, %v344
        %v353 = vld [vmem:[#allocation7 + $0x4] sm:$0x1]
        %v354 = vld [vmem:[#allocation7 + $0xc] sm:$0x1]
        %v355 = vld [vmem:[#allocation7 + $0x14] sm:$0x1]
        %v356 = vlaneseq
        %v357 = vshrl.u32 %v356, 7
        %v358 = vsub.s32 0, %v357
        %v359 = vrot.slane %v353, %v358
        %v360 = vmul.f32 %v225, %v359
        %v361 = vmul.f32 %v226, %v359
        %v362 = vmul.f32 %v227, %v359
        %v363 = vmul.f32 %v228, %v359
        %v364 = vlaneseq
        %v365 = vshrl.u32 %v364, 7
        %v366 = vsub.s32 0, %v365
        %v367 = vrot.slane %v354, %v366
        %v368 = vsub.f32 %v360, %v367
        %v369 = vsub.f32 %v361, %v367
        %v370 = vsub.f32 %v362, %v367
        %v371 = vsub.f32 %v363, %v367
        %v372 = vmul.f32 %v368, %v368
        %v373 = vmul.f32 %v369, %v369
        %v374 = vmul.f32 %v370, %v370
        %v375 = vmul.f32 %v371, %v371
        %v376 = vlaneseq
        %v377 = vshrl.u32 %v376, 7
        %v378 = vsub.s32 0, %v377
        %v379 = vrot.slane %v355, %v378
        %v380 = vsub.f32 %v379, %v372
        %v381 = vsub.f32 %v379, %v373
        %v382 = vsub.f32 %v379, %v374
        %v383 = vsub.f32 %v379, %v375
        %v384 = vld [vmem:[#allocation7 + $0x5] sm:$0x1]
        %v385 = vld [vmem:[#allocation7 + $0xd] sm:$0x1]
        %v386 = vld [vmem:[#allocation7 + $0x15] sm:$0x1]
        %v387 = vlaneseq
        %v388 = vshrl.u32 %v387, 7
        %v389 = vsub.s32 0, %v388
        %v390 = vrot.slane %v384, %v389
        %v391 = vmul.f32 %v225, %v390
        %v392 = vmul.f32 %v226, %v390
        %v393 = vmul.f32 %v227, %v390
        %v394 = vmul.f32 %v228, %v390
        %v395 = vlaneseq
        %v396 = vshrl.u32 %v395, 7
        %v397 = vsub.s32 0, %v396
        %v398 = vrot.slane %v385, %v397
        %v399 = vsub.f32 %v391, %v398
        %v400 = vsub.f32 %v392, %v398
        %v401 = vsub.f32 %v393, %v398
        %v402 = vsub.f32 %v394, %v398
        %v403 = vmul.f32 %v399, %v399
        %v404 = vmul.f32 %v400, %v400
        %v405 = vmul.f32 %v401, %v401
        %v406 = vmul.f32 %v402, %v402
        %v407 = vlaneseq
        %v408 = vshrl.u32 %v407, 7
        %v409 = vsub.s32 0, %v408
        %v410 = vrot.slane %v386, %v409
        %v411 = vsub.f32 %v410, %v403
        %v412 = vsub.f32 %v410, %v404
        %v413 = vsub.f32 %v410, %v405
        %v414 = vsub.f32 %v410, %v406
        %v415 = vld [vmem:[#allocation7 + $0x6] sm:$0x1]
        %v416 = vld [vmem:[#allocation7 + $0xe] sm:$0x1]
        %v417 = vld [vmem:[#allocation7 + $0x16] sm:$0x1]
        %v418 = vlaneseq
        %v419 = vshrl.u32 %v418, 7
        %v420 = vsub.s32 0, %v419
        %v421 = vrot.slane %v415, %v420
        %v422 = vmul.f32 %v225, %v421
        %v423 = vmul.f32 %v226, %v421
        %v424 = vmul.f32 %v227, %v421
        %v425 = vmul.f32 %v228, %v421
        %v426 = vlaneseq
        %v427 = vshrl.u32 %v426, 7
        %v428 = vsub.s32 0, %v427
        %v429 = vrot.slane %v416, %v428
        %v430 = vsub.f32 %v422, %v429
        %v431 = vsub.f32 %v423, %v429
        %v432 = vsub.f32 %v424, %v429
        %v433 = vsub.f32 %v425, %v429
        %v434 = vmul.f32 %v430, %v430
        %v435 = vmul.f32 %v431, %v431
        %v436 = vmul.f32 %v432, %v432
        %v437 = vmul.f32 %v433, %v433
        %v438 = vlaneseq
        %v439 = vshrl.u32 %v438, 7
        %v440 = vsub.s32 0, %v439
        %v441 = vrot.slane %v417, %v440
        %v442 = vsub.f32 %v441, %v434
        %v443 = vsub.f32 %v441, %v435
        %v444 = vsub.f32 %v441, %v436
        %v445 = vsub.f32 %v441, %v437
        %v446 = vld [vmem:[#allocation7 + $0x7] sm:$0x1]
        %v447 = vld [vmem:[#allocation7 + $0xf] sm:$0x1]
        %v448 = vld [vmem:[#allocation7 + $0x17] sm:$0x1]
        %v449 = vlaneseq
        %v450 = vshrl.u32 %v449, 7
        %v451 = vsub.s32 0, %v450
        %v452 = vrot.slane %v446, %v451
        %v453 = vmul.f32 %v225, %v452
        %v454 = vmul.f32 %v226, %v452
        %v455 = vmul.f32 %v227, %v452
        %v456 = vmul.f32 %v228, %v452
        %v457 = vlaneseq
        %v458 = vshrl.u32 %v457, 7
        %v459 = vsub.s32 0, %v458
        %v460 = vrot.slane %v447, %v459
        %v461 = vsub.f32 %v453, %v460
        %v462 = vsub.f32 %v454, %v460
        %v463 = vsub.f32 %v455, %v460
        %v464 = vsub.f32 %v456, %v460
        %v465 = vmul.f32 %v461, %v461
        %v466 = vmul.f32 %v462, %v462
        %v467 = vmul.f32 %v463, %v463
        %v468 = vmul.f32 %v464, %v464
        %v469 = vlaneseq
        %v470 = vshrl.u32 %v469, 7
        %v471 = vsub.s32 0, %v470
        %v472 = vrot.slane %v448, %v471
        %v473 = vsub.f32 %v472, %v465
        %v474 = vsub.f32 %v472, %v466
        %v475 = vsub.f32 %v472, %v467
        %v476 = vsub.f32 %v472, %v468
        %v477 = vmax.f32 %v256, %v287
        %v478 = vmax.f32 %v257, %v288
        %v479 = vmax.f32 %v258, %v289
        %v480 = vmax.f32 %v259, %v290
        %v481 = vmax.f32 %v477, %v318
        %v482 = vmax.f32 %v478, %v319
        %v483 = vmax.f32 %v479, %v320
        %v484 = vmax.f32 %v480, %v321
        %v485 = vmax.f32 %v481, %v349
        %v486 = vmax.f32 %v482, %v350
        %v487 = vmax.f32 %v483, %v351
        %v488 = vmax.f32 %v484, %v352
        %v489 = vmax.f32 %v485, %v380
        %v490 = vmax.f32 %v486, %v381
        %v491 = vmax.f32 %v487, %v382
        %v492 = vmax.f32 %v488, %v383
        %v493 = vmax.f32 %v489, %v411
        %v494 = vmax.f32 %v490, %v412
        %v495 = vmax.f32 %v491, %v413
        %v496 = vmax.f32 %v492, %v414
        %v497 = vmax.f32 %v493, %v442
        %v498 = vmax.f32 %v494, %v443
        %v499 = vmax.f32 %v495, %v444
        %v500 = vmax.f32 %v496, %v445
        %v501 = vmax.f32 %v497, %v473
        %v502 = vmax.f32 %v498, %v474
        %v503 = vmax.f32 %v499, %v475
        %v504 = vmax.f32 %v500, %v476
        %v505 = vsub.f32 %v256, %v501
        %v506 = vsub.f32 %v257, %v502
        %v507 = vsub.f32 %v258, %v503
        %v508 = vsub.f32 %v259, %v504
        %v509 = vmul.f32 %v505, 1.442695
        %v510 = vpow.pop %v509
        %v511 = vmul.f32 %v506, 1.442695
        %v512 = vpow.pop %v511
        %v513 = vmul.f32 %v507, 1.442695
        %v514 = vpow.pop %v513
        %v515 = vmul.f32 %v508, 1.442695
        %v516 = vpow.pop %v515
        %s517 = sld [smem:[#allocation3]]
        %v518 = vstv %s517
        %v519 = vmul.f32 %v518, %v510
        %v520 = vmul.f32 %v518, %v512
        %v521 = vmul.f32 %v518, %v514
        %v522 = vmul.f32 %v518, %v516
        %s523 = sld [smem:[#allocation3 + $0x80]]
        %v524 = vstv %s523
        %v525 = vmul.f32 %v524, %v510
        %v526 = vmul.f32 %v524, %v512
        %v527 = vmul.f32 %v524, %v514
        %v528 = vmul.f32 %v524, %v516
        %s529 = sld [smem:[#allocation3 + $0x100]]
        %v530 = vstv %s529
        %v531 = vmul.f32 %v530, %v510
        %v532 = vmul.f32 %v530, %v512
        %v533 = vmul.f32 %v530, %v514
        %v534 = vmul.f32 %v530, %v516
        %s535 = sld [smem:[#allocation3 + $0x180]]
        %v536 = vstv %s535
        %v537 = vmul.f32 %v536, %v510
        %v538 = vmul.f32 %v536, %v512
        %v539 = vmul.f32 %v536, %v514
        %v540 = vmul.f32 %v536, %v516
        %v541 = vsub.f32 %v287, %v501
        %v542 = vsub.f32 %v288, %v502
        %v543 = vsub.f32 %v289, %v503
        %v544 = vsub.f32 %v290, %v504
        %v545 = vmul.f32 %v541, 1.442695
        %v546 = vpow.pop %v545
        %v547 = vmul.f32 %v542, 1.442695
        %v548 = vpow.pop %v547
        %v549 = vmul.f32 %v543, 1.442695
        %v550 = vpow.pop %v549
        %v551 = vmul.f32 %v544, 1.442695
        %v552 = vpow.pop %v551
        %s553 = sld [smem:[#allocation3 + $0x1]]
        %v554 = vstv %s553
        %v555 = vmul.f32 %v554, %v546
        %v556 = vmul.f32 %v554, %v548
        %v557 = vmul.f32 %v554, %v550
        %v558 = vmul.f32 %v554, %v552
        %v559 = vadd.f32 %v519, %v555
        %v560 = vadd.f32 %v520, %v556
        %v561 = vadd.f32 %v521, %v557
        %v562 = vadd.f32 %v522, %v558
        %s563 = sld [smem:[#allocation3 + $0x81]]
        %v564 = vstv %s563
        %v565 = vmul.f32 %v564, %v546
        %v566 = vmul.f32 %v564, %v548
        %v567 = vmul.f32 %v564, %v550
        %v568 = vmul.f32 %v564, %v552
        %v569 = vadd.f32 %v525, %v565
        %v570 = vadd.f32 %v526, %v566
        %v571 = vadd.f32 %v527, %v567
        %v572 = vadd.f32 %v528, %v568
        %s573 = sld [smem:[#allocation3 + $0x101]]
        %v574 = vstv %s573
        %v575 = vmul.f32 %v574, %v546
        %v576 = vmul.f32 %v574, %v548
        %v577 = vmul.f32 %v574, %v550
        %v578 = vmul.f32 %v574, %v552
        %v579 = vadd.f32 %v531, %v575
        %v580 = vadd.f32 %v532, %v576
        %v581 = vadd.f32 %v533, %v577
        %v582 = vadd.f32 %v534, %v578
        %s583 = sld [smem:[#allocation3 + $0x181]]
        %v584 = vstv %s583
        %v585 = vmul.f32 %v584, %v546
        %v586 = vmul.f32 %v584, %v548
        %v587 = vmul.f32 %v584, %v550
        %v588 = vmul.f32 %v584, %v552
        %v589 = vadd.f32 %v537, %v585
        %v590 = vadd.f32 %v538, %v586
        %v591 = vadd.f32 %v539, %v587
        %v592 = vadd.f32 %v540, %v588
        %v593 = vsub.f32 %v318, %v501
        %v594 = vsub.f32 %v319, %v502
        %v595 = vsub.f32 %v320, %v503
        %v596 = vsub.f32 %v321, %v504
        %v597 = vmul.f32 %v593, 1.442695
        %v598 = vpow.pop %v597
        %v599 = vmul.f32 %v594, 1.442695
        %v600 = vpow.pop %v599
        %v601 = vmul.f32 %v595, 1.442695
        %v602 = vpow.pop %v601
        %v603 = vmul.f32 %v596, 1.442695
        %v604 = vpow.pop %v603
        %s605 = sld [smem:[#allocation3 + $0x2]]
        %v606 = vstv %s605
        %v607 = vmul.f32 %v606, %v598
        %v608 = vmul.f32 %v606, %v600
        %v609 = vmul.f32 %v606, %v602
        %v610 = vmul.f32 %v606, %v604
        %v611 = vadd.f32 %v559, %v607
        %v612 = vadd.f32 %v560, %v608
        %v613 = vadd.f32 %v561, %v609
        %v614 = vadd.f32 %v562, %v610
        %s615 = sld [smem:[#allocation3 + $0x82]]
        %v616 = vstv %s615
        %v617 = vmul.f32 %v616, %v598
        %v618 = vmul.f32 %v616, %v600
        %v619 = vmul.f32 %v616, %v602
        %v620 = vmul.f32 %v616, %v604
        %v621 = vadd.f32 %v569, %v617
        %v622 = vadd.f32 %v570, %v618
        %v623 = vadd.f32 %v571, %v619
        %v624 = vadd.f32 %v572, %v620
        %s625 = sld [smem:[#allocation3 + $0x102]]
        %v626 = vstv %s625
        %v627 = vmul.f32 %v626, %v598
        %v628 = vmul.f32 %v626, %v600
        %v629 = vmul.f32 %v626, %v602
        %v630 = vmul.f32 %v626, %v604
        %v631 = vadd.f32 %v579, %v627
        %v632 = vadd.f32 %v580, %v628
        %v633 = vadd.f32 %v581, %v629
        %v634 = vadd.f32 %v582, %v630
        %s635 = sld [smem:[#allocation3 + $0x182]]
        %v636 = vstv %s635
        %v637 = vmul.f32 %v636, %v598
        %v638 = vmul.f32 %v636, %v600
        %v639 = vmul.f32 %v636, %v602
        %v640 = vmul.f32 %v636, %v604
        %v641 = vadd.f32 %v589, %v637
        %v642 = vadd.f32 %v590, %v638
        %v643 = vadd.f32 %v591, %v639
        %v644 = vadd.f32 %v592, %v640
        %v645 = vsub.f32 %v349, %v501
        %v646 = vsub.f32 %v350, %v502
        %v647 = vsub.f32 %v351, %v503
        %v648 = vsub.f32 %v352, %v504
        %v649 = vmul.f32 %v645, 1.442695
        %v650 = vpow.pop %v649
        %v651 = vmul.f32 %v646, 1.442695
        %v652 = vpow.pop %v651
        %v653 = vmul.f32 %v647, 1.442695
        %v654 = vpow.pop %v653
        %v655 = vmul.f32 %v648, 1.442695
        %v656 = vpow.pop %v655
        %s657 = sld [smem:[#allocation3 + $0x3]]
        %v658 = vstv %s657
        %v659 = vmul.f32 %v658, %v650
        %v660 = vmul.f32 %v658, %v652
        %v661 = vmul.f32 %v658, %v654
        %v662 = vmul.f32 %v658, %v656
        %v663 = vadd.f32 %v611, %v659
        %v664 = vadd.f32 %v612, %v660
        %v665 = vadd.f32 %v613, %v661
        %v666 = vadd.f32 %v614, %v662
        %s667 = sld [smem:[#allocation3 + $0x83]]
        %v668 = vstv %s667
        %v669 = vmul.f32 %v668, %v650
        %v670 = vmul.f32 %v668, %v652
        %v671 = vmul.f32 %v668, %v654
        %v672 = vmul.f32 %v668, %v656
        %v673 = vadd.f32 %v621, %v669
        %v674 = vadd.f32 %v622, %v670
        %v675 = vadd.f32 %v623, %v671
        %v676 = vadd.f32 %v624, %v672
        %s677 = sld [smem:[#allocation3 + $0x103]]
        %v678 = vstv %s677
        %v679 = vmul.f32 %v678, %v650
        %v680 = vmul.f32 %v678, %v652
        %v681 = vmul.f32 %v678, %v654
        %v682 = vmul.f32 %v678, %v656
        %v683 = vadd.f32 %v631, %v679
        %v684 = vadd.f32 %v632, %v680
        %v685 = vadd.f32 %v633, %v681
        %v686 = vadd.f32 %v634, %v682
        %s687 = sld [smem:[#allocation3 + $0x183]]
        %v688 = vstv %s687
        %v689 = vmul.f32 %v688, %v650
        %v690 = vmul.f32 %v688, %v652
        %v691 = vmul.f32 %v688, %v654
        %v692 = vmul.f32 %v688, %v656
        %v693 = vadd.f32 %v641, %v689
        %v694 = vadd.f32 %v642, %v690
        %v695 = vadd.f32 %v643, %v691
        %v696 = vadd.f32 %v644, %v692
        %v697 = vsub.f32 %v380, %v501
        %v698 = vsub.f32 %v381, %v502
        %v699 = vsub.f32 %v382, %v503
        %v700 = vsub.f32 %v383, %v504
        %v701 = vmul.f32 %v697, 1.442695
        %v702 = vpow.pop %v701
        %v703 = vmul.f32 %v698, 1.442695
        %v704 = vpow.pop %v703
        %v705 = vmul.f32 %v699, 1.442695
        %v706 = vpow.pop %v705
        %v707 = vmul.f32 %v700, 1.442695
        %v708 = vpow.pop %v707
        %s709 = sld [smem:[#allocation3 + $0x4]]
        %v710 = vstv %s709
        %v711 = vmul.f32 %v710, %v702
        %v712 = vmul.f32 %v710, %v704
        %v713 = vmul.f32 %v710, %v706
        %v714 = vmul.f32 %v710, %v708
        %v715 = vadd.f32 %v663, %v711
        %v716 = vadd.f32 %v664, %v712
        %v717 = vadd.f32 %v665, %v713
        %v718 = vadd.f32 %v666, %v714
        %s719 = sld [smem:[#allocation3 + $0x84]]
        %v720 = vstv %s719
        %v721 = vmul.f32 %v720, %v702
        %v722 = vmul.f32 %v720, %v704
        %v723 = vmul.f32 %v720, %v706
        %v724 = vmul.f32 %v720, %v708
        %v725 = vadd.f32 %v673, %v721
        %v726 = vadd.f32 %v674, %v722
        %v727 = vadd.f32 %v675, %v723
        %v728 = vadd.f32 %v676, %v724
        %s729 = sld [smem:[#allocation3 + $0x104]]
        %v730 = vstv %s729
        %v731 = vmul.f32 %v730, %v702
        %v732 = vmul.f32 %v730, %v704
        %v733 = vmul.f32 %v730, %v706
        %v734 = vmul.f32 %v730, %v708
        %v735 = vadd.f32 %v683, %v731
        %v736 = vadd.f32 %v684, %v732
        %v737 = vadd.f32 %v685, %v733
        %v738 = vadd.f32 %v686, %v734
        %s739 = sld [smem:[#allocation3 + $0x184]]
        %v740 = vstv %s739
        %v741 = vmul.f32 %v740, %v702
        %v742 = vmul.f32 %v740, %v704
        %v743 = vmul.f32 %v740, %v706
        %v744 = vmul.f32 %v740, %v708
        %v745 = vadd.f32 %v693, %v741
        %v746 = vadd.f32 %v694, %v742
        %v747 = vadd.f32 %v695, %v743
        %v748 = vadd.f32 %v696, %v744
        %v749 = vsub.f32 %v411, %v501
        %v750 = vsub.f32 %v412, %v502
        %v751 = vsub.f32 %v413, %v503
        %v752 = vsub.f32 %v414, %v504
        %v753 = vmul.f32 %v749, 1.442695
        %v754 = vpow.pop %v753
        %v755 = vmul.f32 %v750, 1.442695
        %v756 = vpow.pop %v755
        %v757 = vmul.f32 %v751, 1.442695
        %v758 = vpow.pop %v757
        %v759 = vmul.f32 %v752, 1.442695
        %v760 = vpow.pop %v759
        %s761 = sld [smem:[#allocation3 + $0x5]]
        %v762 = vstv %s761
        %v763 = vmul.f32 %v762, %v754
        %v764 = vmul.f32 %v762, %v756
        %v765 = vmul.f32 %v762, %v758
        %v766 = vmul.f32 %v762, %v760
        %v767 = vadd.f32 %v715, %v763
        %v768 = vadd.f32 %v716, %v764
        %v769 = vadd.f32 %v717, %v765
        %v770 = vadd.f32 %v718, %v766
        %s771 = sld [smem:[#allocation3 + $0x85]]
        %v772 = vstv %s771
        %v773 = vmul.f32 %v772, %v754
        %v774 = vmul.f32 %v772, %v756
        %v775 = vmul.f32 %v772, %v758
        %v776 = vmul.f32 %v772, %v760
        %v777 = vadd.f32 %v725, %v773
        %v778 = vadd.f32 %v726, %v774
        %v779 = vadd.f32 %v727, %v775
        %v780 = vadd.f32 %v728, %v776
        %s781 = sld [smem:[#allocation3 + $0x105]]
        %v782 = vstv %s781
        %v783 = vmul.f32 %v782, %v754
        %v784 = vmul.f32 %v782, %v756
        %v785 = vmul.f32 %v782, %v758
        %v786 = vmul.f32 %v782, %v760
        %v787 = vadd.f32 %v735, %v783
        %v788 = vadd.f32 %v736, %v784
        %v789 = vadd.f32 %v737, %v785
        %v790 = vadd.f32 %v738, %v786
        %s791 = sld [smem:[#allocation3 + $0x185]]
        %v792 = vstv %s791
        %v793 = vmul.f32 %v792, %v754
        %v794 = vmul.f32 %v792, %v756
        %v795 = vmul.f32 %v792, %v758
        %v796 = vmul.f32 %v792, %v760
        %v797 = vadd.f32 %v745, %v793
        %v798 = vadd.f32 %v746, %v794
        %v799 = vadd.f32 %v747, %v795
        %v800 = vadd.f32 %v748, %v796
        %v801 = vsub.f32 %v442, %v501
        %v802 = vsub.f32 %v443, %v502
        %v803 = vsub.f32 %v444, %v503
        %v804 = vsub.f32 %v445, %v504
        %v805 = vmul.f32 %v801, 1.442695
        %v806 = vpow.pop %v805
        %v807 = vmul.f32 %v802, 1.442695
        %v808 = vpow.pop %v807
        %v809 = vmul.f32 %v803, 1.442695
        %v810 = vpow.pop %v809
        %v811 = vmul.f32 %v804, 1.442695
        %v812 = vpow.pop %v811
        %s813 = sld [smem:[#allocation3 + $0x6]]
        %v814 = vstv %s813
        %v815 = vmul.f32 %v814, %v806
        %v816 = vmul.f32 %v814, %v808
        %v817 = vmul.f32 %v814, %v810
        %v818 = vmul.f32 %v814, %v812
        %v819 = vadd.f32 %v767, %v815
        %v820 = vadd.f32 %v768, %v816
        %v821 = vadd.f32 %v769, %v817
        %v822 = vadd.f32 %v770, %v818
        %s823 = sld [smem:[#allocation3 + $0x86]]
        %v824 = vstv %s823
        %v825 = vmul.f32 %v824, %v806
        %v826 = vmul.f32 %v824, %v808
        %v827 = vmul.f32 %v824, %v810
        %v828 = vmul.f32 %v824, %v812
        %v829 = vadd.f32 %v777, %v825
        %v830 = vadd.f32 %v778, %v826
        %v831 = vadd.f32 %v779, %v827
        %v832 = vadd.f32 %v780, %v828
        %s833 = sld [smem:[#allocation3 + $0x106]]
        %v834 = vstv %s833
        %v835 = vmul.f32 %v834, %v806
        %v836 = vmul.f32 %v834, %v808
        %v837 = vmul.f32 %v834, %v810
        %v838 = vmul.f32 %v834, %v812
        %v839 = vadd.f32 %v787, %v835
        %v840 = vadd.f32 %v788, %v836
        %v841 = vadd.f32 %v789, %v837
        %v842 = vadd.f32 %v790, %v838
        %s843 = sld [smem:[#allocation3 + $0x186]]
        %v844 = vstv %s843
        %v845 = vmul.f32 %v844, %v806
        %v846 = vmul.f32 %v844, %v808
        %v847 = vmul.f32 %v844, %v810
        %v848 = vmul.f32 %v844, %v812
        %v849 = vadd.f32 %v797, %v845
        %v850 = vadd.f32 %v798, %v846
        %v851 = vadd.f32 %v799, %v847
        %v852 = vadd.f32 %v800, %v848
        %v853 = vsub.f32 %v473, %v501
        %v854 = vsub.f32 %v474, %v502
        %v855 = vsub.f32 %v475, %v503
        %v856 = vsub.f32 %v476, %v504
        %v857 = vmul.f32 %v853, 1.442695
        %v858 = vpow.pop %v857
        %v859 = vmul.f32 %v854, 1.442695
        %v860 = vpow.pop %v859
        %v861 = vmul.f32 %v855, 1.442695
        %v862 = vpow.pop %v861
        %v863 = vmul.f32 %v856, 1.442695
        %v864 = vpow.pop %v863
        %s865 = sld [smem:[#allocation3 + $0x7]]
        %v866 = vstv %s865
        %v867 = vmul.f32 %v866, %v858
        %v868 = vmul.f32 %v866, %v860
        %v869 = vmul.f32 %v866, %v862
        %v870 = vmul.f32 %v866, %v864
        %v871 = vadd.f32 %v819, %v867
        %v872 = vadd.f32 %v820, %v868
        %v873 = vadd.f32 %v821, %v869
        %v874 = vadd.f32 %v822, %v870
        %s875 = sld [smem:[#allocation3 + $0x87]]
        %v876 = vstv %s875
        %v877 = vmul.f32 %v876, %v858
        %v878 = vmul.f32 %v876, %v860
        %v879 = vmul.f32 %v876, %v862
        %v880 = vmul.f32 %v876, %v864
        %v881 = vadd.f32 %v829, %v877
        %v882 = vadd.f32 %v830, %v878
        %v883 = vadd.f32 %v831, %v879
        %v884 = vadd.f32 %v832, %v880
        %s885 = sld [smem:[#allocation3 + $0x107]]
        %v886 = vstv %s885
        %v887 = vmul.f32 %v886, %v858
        %v888 = vmul.f32 %v886, %v860
        %v889 = vmul.f32 %v886, %v862
        %v890 = vmul.f32 %v886, %v864
        %v891 = vadd.f32 %v839, %v887
        %v892 = vadd.f32 %v840, %v888
        %v893 = vadd.f32 %v841, %v889
        %v894 = vadd.f32 %v842, %v890
        %s895 = sld [smem:[#allocation3 + $0x187]]
        %v896 = vstv %s895
        %v897 = vmul.f32 %v896, %v858
        %v898 = vmul.f32 %v896, %v860
        %v899 = vmul.f32 %v896, %v862
        %v900 = vmul.f32 %v896, %v864
        %v901 = vadd.f32 %v849, %v897
        %v902 = vadd.f32 %v850, %v898
        %v903 = vadd.f32 %v851, %v899
        %v904 = vadd.f32 %v852, %v900
        %v905 = vld [vmem:[#allocation9] sm:$0xff]
        %v906 = vld [vmem:[#allocation9 + $0x8] sm:$0xff]
        %v907 = vld [vmem:[#allocation9 + $0x10] sm:$0xff]
        %v908 = vld [vmem:[#allocation9 + $0x18] sm:$0xff]
        %v909 = vld [vmem:[#allocation9 + $0x20] sm:$0xff]
        %v910 = vld [vmem:[#allocation9 + $0x28] sm:$0xff]
        %v911 = vld [vmem:[#allocation9 + $0x30] sm:$0xff]
        %v912 = vld [vmem:[#allocation9 + $0x38] sm:$0xff]
        %v913 = vld [vmem:[#allocation9 + $0x40] sm:$0xff]
        %v914 = vld [vmem:[#allocation9 + $0x48] sm:$0xff]
        %v915 = vld [vmem:[#allocation9 + $0x50] sm:$0xff]
        %v916 = vld [vmem:[#allocation9 + $0x58] sm:$0xff]
        %v917 = vld [vmem:[#allocation9 + $0x60] sm:$0xff]
        %v918 = vld [vmem:[#allocation9 + $0x68] sm:$0xff]
        %v919 = vld [vmem:[#allocation9 + $0x70] sm:$0xff]
        %v920 = vld [vmem:[#allocation9 + $0x78] sm:$0xff]
        %v921 = vlog2.pop %v871
        %v922 = vmul.f32 %v921, 0.6931472
        %v923 = vlog2.pop %v872
        %v924 = vmul.f32 %v923, 0.6931472
        %v925 = vlog2.pop %v873
        %v926 = vmul.f32 %v925, 0.6931472
        %v927 = vlog2.pop %v874
        %v928 = vmul.f32 %v927, 0.6931472
        %s929 = scalar_lea.vmem [#allocation9], 128
        %v930 = vld [vmem:[%s929] sm:$0xff]
        %v931 = vld [vmem:[%s929 + $0x8] sm:$0xff]
        %v932 = vld [vmem:[%s929 + $0x10] sm:$0xff]
        %v933 = vld [vmem:[%s929 + $0x18] sm:$0xff]
        %v934 = vld [vmem:[%s929 + $0x20] sm:$0xff]
        %v935 = vld [vmem:[%s929 + $0x28] sm:$0xff]
        %v936 = vld [vmem:[%s929 + $0x30] sm:$0xff]
        %v937 = vld [vmem:[%s929 + $0x38] sm:$0xff]
        %v938 = vld [vmem:[%s929 + $0x40] sm:$0xff]
        %v939 = vld [vmem:[%s929 + $0x48] sm:$0xff]
        %v940 = vld [vmem:[%s929 + $0x50] sm:$0xff]
        %v941 = vld [vmem:[%s929 + $0x58] sm:$0xff]
        %v942 = vld [vmem:[%s929 + $0x60] sm:$0xff]
        %v943 = vld [vmem:[%s929 + $0x68] sm:$0xff]
        %v944 = vld [vmem:[%s929 + $0x70] sm:$0xff]
        %v945 = vld [vmem:[%s929 + $0x78] sm:$0xff]
        %946 = vmatprep.subr.mxu0 0.0
        %947 = vmatpush1.msra.mxu0 %v945
        %948 = vmatprep.subr.mxu0 0.0
        %949 = vmatpush1.msra.mxu0 %v944
        %950 = vmatprep.subr.mxu0 0.0
        %951 = vmatpush1.msra.mxu0 %v943
        %952 = vmatprep.subr.mxu0 0.0
        %953 = vmatpush1.msra.mxu0 %v942
        %954 = vmatprep.subr.mxu0 0.0
        %955 = vmatpush1.msra.mxu0 %v941
        %956 = vmatprep.subr.mxu0 0.0
        %957 = vmatpush1.msra.mxu0 %v940
        %958 = vmatprep.subr.mxu0 0.0
        %959 = vmatpush1.msra.mxu0 %v939
        %960 = vmatprep.subr.mxu0 0.0
        %961 = vmatpush1.msra.mxu0 %v938
        %962 = vmatprep.subr.mxu0 0.0
        %963 = vmatpush1.msra.mxu0 %v937
        %964 = vmatprep.subr.mxu0 0.0
        %965 = vmatpush1.msra.mxu0 %v936
        %966 = vmatprep.subr.mxu0 0.0
        %967 = vmatpush1.msra.mxu0 %v935
        %968 = vmatprep.subr.mxu0 0.0
        %969 = vmatpush1.msra.mxu0 %v934
        %970 = vmatprep.subr.mxu0 0.0
        %971 = vmatpush1.msra.mxu0 %v933
        %972 = vmatprep.subr.mxu0 0.0
        %973 = vmatpush1.msra.mxu0 %v932
        %974 = vmatprep.subr.mxu0 0.0
        %975 = vmatpush1.msra.mxu0 %v931
        %976 = vmatprep.subr.mxu0 0.0
        %977 = vmatpush1.msra.mxu0 %v930
        %978 = vmatprep.subr.mxu0 0.0
        %979 = vmatpush2.msra.mxu0 0.0
        %980 = vmatprep.subr.mxu0 0.0
        %981 = vmatpush2.msra.mxu0 0.0
        %982 = vmatprep.subr.mxu0 0.0
        %983 = vmatpush2.msra.mxu0 0.0
        %984 = vmatprep.subr.mxu0 0.0
        %985 = vmatpush2.msra.mxu0 0.0
        %986 = vmatprep.subr.mxu0 0.0
        %987 = vmatpush2.msra.mxu0 0.0
        %988 = vmatprep.subr.mxu0 0.0
        %989 = vmatpush2.msra.mxu0 0.0
        %990 = vmatprep.subr.mxu0 0.0
        %991 = vmatpush2.msra.mxu0 0.0
        %992 = vmatprep.subr.mxu0 0.0
        %993 = vmatpush2.msra.mxu0 0.0
        %994 = vmatprep.subr.mxu0 0.0
        %995 = vmatpush2.msra.mxu0 0.0
        %996 = vmatprep.subr.mxu0 0.0
        %997 = vmatpush2.msra.mxu0 0.0
        %998 = vmatprep.subr.mxu0 0.0
        %999 = vmatpush2.msra.mxu0 0.0
        %1000 = vmatprep.subr.mxu0 0.0
        %1001 = vmatpush2.msra.mxu0 0.0
        %1002 = vmatprep.subr.mxu0 0.0
        %1003 = vmatpush2.msra.mxu0 0.0
        %1004 = vmatprep.subr.mxu0 0.0
        %1005 = vmatpush2.msra.mxu0 0.0
        %1006 = vmatprep.subr.mxu0 0.0
        %1007 = vmatpush2.msra.mxu0 0.0
        %1008 = vmatprep.subr.mxu0 0.0
        %1009 = vmatpush2.msra.mxu0 0.0
        %1010 = vmatprep.mubr.f32.mxu0 0.0
        %1011 = vmatmul.mubr.f32.gmra.mxu0 %v922
        %v1012 = vpop.f32.mrf.mxu0
        %v1013 = vadd.f32 0.0, %v1012
        %v1014 = vpop.f32.mrf.mxu0
        %1015 = vmatprep.mubr.f32.mxu0 0.0
        %1016 = vmatmul.mubr.f32.gmra.mxu0 %v924
        %v1017 = vpop.f32.mrf.mxu0
        %v1018 = vadd.f32 0.0, %v1017
        %v1019 = vpop.f32.mrf.mxu0
        %1020 = vmatprep.mubr.f32.mxu0 0.0
        %1021 = vmatmul.mubr.f32.gmra.mxu0 %v926
        %v1022 = vpop.f32.mrf.mxu0
        %v1023 = vadd.f32 0.0, %v1022
        %v1024 = vpop.f32.mrf.mxu0
        %1025 = vmatprep.mubr.f32.mxu0 0.0
        %1026 = vmatmul.mubr.f32.gmra.mxu0 %v928
        %v1027 = vpop.f32.mrf.mxu0
        %v1028 = vadd.f32 0.0, %v1027
        %v1029 = vpop.f32.mrf.mxu0
        %1030 = vdwg.mxu0
        %1031 = vmatprep.subr.mxu0 0.0
        %1032 = vmatpush1.msra.mxu0 %v920
        %1033 = vmatprep.subr.mxu0 0.0
        %1034 = vmatpush1.msra.mxu0 %v919
        %1035 = vmatprep.subr.mxu0 0.0
        %1036 = vmatpush1.msra.mxu0 %v918
        %1037 = vmatprep.subr.mxu0 0.0
        %1038 = vmatpush1.msra.mxu0 %v917
        %1039 = vmatprep.subr.mxu0 0.0
        %1040 = vmatpush1.msra.mxu0 %v916
        %1041 = vmatprep.subr.mxu0 0.0
        %1042 = vmatpush1.msra.mxu0 %v915
        %1043 = vmatprep.subr.mxu0 0.0
        %1044 = vmatpush1.msra.mxu0 %v914
        %1045 = vmatprep.subr.mxu0 0.0
        %1046 = vmatpush1.msra.mxu0 %v913
        %1047 = vmatprep.subr.mxu0 0.0
        %1048 = vmatpush1.msra.mxu0 %v912
        %1049 = vmatprep.subr.mxu0 0.0
        %1050 = vmatpush1.msra.mxu0 %v911
        %1051 = vmatprep.subr.mxu0 0.0
        %1052 = vmatpush1.msra.mxu0 %v910
        %1053 = vmatprep.subr.mxu0 0.0
        %1054 = vmatpush1.msra.mxu0 %v909
        %1055 = vmatprep.subr.mxu0 0.0
        %1056 = vmatpush1.msra.mxu0 %v908
        %1057 = vmatprep.subr.mxu0 0.0
        %1058 = vmatpush1.msra.mxu0 %v907
        %1059 = vmatprep.subr.mxu0 0.0
        %1060 = vmatpush1.msra.mxu0 %v906
        %1061 = vmatprep.subr.mxu0 0.0
        %1062 = vmatpush1.msra.mxu0 %v905
        %1063 = vmatprep.subr.mxu0 0.0
        %1064 = vmatpush2.msra.mxu0 0.0
        %1065 = vmatprep.subr.mxu0 0.0
        %1066 = vmatpush2.msra.mxu0 0.0
        %1067 = vmatprep.subr.mxu0 0.0
        %1068 = vmatpush2.msra.mxu0 0.0
        %1069 = vmatprep.subr.mxu0 0.0
        %1070 = vmatpush2.msra.mxu0 0.0
        %1071 = vmatprep.subr.mxu0 0.0
        %1072 = vmatpush2.msra.mxu0 0.0
        %1073 = vmatprep.subr.mxu0 0.0
        %1074 = vmatpush2.msra.mxu0 0.0
        %1075 = vmatprep.subr.mxu0 0.0
        %1076 = vmatpush2.msra.mxu0 0.0
        %1077 = vmatprep.subr.mxu0 0.0
        %1078 = vmatpush2.msra.mxu0 0.0
        %1079 = vmatprep.subr.mxu0 0.0
        %1080 = vmatpush2.msra.mxu0 0.0
        %1081 = vmatprep.subr.mxu0 0.0
        %1082 = vmatpush2.msra.mxu0 0.0
        %1083 = vmatprep.subr.mxu0 0.0
        %1084 = vmatpush2.msra.mxu0 0.0
        %1085 = vmatprep.subr.mxu0 0.0
        %1086 = vmatpush2.msra.mxu0 0.0
        %1087 = vmatprep.subr.mxu0 0.0
        %1088 = vmatpush2.msra.mxu0 0.0
        %1089 = vmatprep.subr.mxu0 0.0
        %1090 = vmatpush2.msra.mxu0 0.0
        %1091 = vmatprep.subr.mxu0 0.0
        %1092 = vmatpush2.msra.mxu0 0.0
        %1093 = vmatprep.subr.mxu0 0.0
        %1094 = vmatpush2.msra.mxu0 0.0
        %1095 = vmatprep.mubr.f32.mxu0 0.0
        %1096 = vmatmul.mubr.f32.gmra.mxu0 %v501
        %v1097 = vpop.f32.mrf.mxu0
        %v1098 = vadd.f32 %v1013, %v1097
        %v1099 = vpop.f32.mrf.mxu0
        %1100 = vmatprep.mubr.f32.mxu0 0.0
        %1101 = vmatmul.mubr.f32.gmra.mxu0 %v502
        %v1102 = vpop.f32.mrf.mxu0
        %v1103 = vadd.f32 %v1018, %v1102
        %v1104 = vpop.f32.mrf.mxu0
        %1105 = vmatprep.mubr.f32.mxu0 0.0
        %1106 = vmatmul.mubr.f32.gmra.mxu0 %v503
        %v1107 = vpop.f32.mrf.mxu0
        %v1108 = vadd.f32 %v1023, %v1107
        %v1109 = vpop.f32.mrf.mxu0
        %1110 = vmatprep.mubr.f32.mxu0 0.0
        %1111 = vmatmul.mubr.f32.gmra.mxu0 %v504
        %v1112 = vpop.f32.mrf.mxu0
        %v1113 = vadd.f32 %v1028, %v1112
        %v1114 = vpop.f32.mrf.mxu0
        %1115 = vdwg.mxu0
        %v1116 = vlog2.pop %v881
        %v1117 = vmul.f32 %v1116, 0.6931472
        %v1118 = vlog2.pop %v882
        %v1119 = vmul.f32 %v1118, 0.6931472
        %v1120 = vlog2.pop %v883
        %v1121 = vmul.f32 %v1120, 0.6931472
        %v1122 = vlog2.pop %v884
        %v1123 = vmul.f32 %v1122, 0.6931472
        %s1124 = scalar_lea.vmem [#allocation9], 256
        %v1125 = vld [vmem:[%s1124] sm:$0xff]
        %v1126 = vld [vmem:[%s1124 + $0x8] sm:$0xff]
        %v1127 = vld [vmem:[%s1124 + $0x10] sm:$0xff]
        %v1128 = vld [vmem:[%s1124 + $0x18] sm:$0xff]
        %v1129 = vld [vmem:[%s1124 + $0x20] sm:$0xff]
        %v1130 = vld [vmem:[%s1124 + $0x28] sm:$0xff]
        %v1131 = vld [vmem:[%s1124 + $0x30] sm:$0xff]
        %v1132 = vld [vmem:[%s1124 + $0x38] sm:$0xff]
        %v1133 = vld [vmem:[%s1124 + $0x40] sm:$0xff]
        %v1134 = vld [vmem:[%s1124 + $0x48] sm:$0xff]
        %v1135 = vld [vmem:[%s1124 + $0x50] sm:$0xff]
        %v1136 = vld [vmem:[%s1124 + $0x58] sm:$0xff]
        %v1137 = vld [vmem:[%s1124 + $0x60] sm:$0xff]
        %v1138 = vld [vmem:[%s1124 + $0x68] sm:$0xff]
        %v1139 = vld [vmem:[%s1124 + $0x70] sm:$0xff]
        %v1140 = vld [vmem:[%s1124 + $0x78] sm:$0xff]
        %1141 = vmatprep.subr.mxu0 0.0
        %1142 = vmatpush1.msra.mxu0 %v1140
        %1143 = vmatprep.subr.mxu0 0.0
        %1144 = vmatpush1.msra.mxu0 %v1139
        %1145 = vmatprep.subr.mxu0 0.0
        %1146 = vmatpush1.msra.mxu0 %v1138
        %1147 = vmatprep.subr.mxu0 0.0
        %1148 = vmatpush1.msra.mxu0 %v1137
        %1149 = vmatprep.subr.mxu0 0.0
        %1150 = vmatpush1.msra.mxu0 %v1136
        %1151 = vmatprep.subr.mxu0 0.0
        %1152 = vmatpush1.msra.mxu0 %v1135
        %1153 = vmatprep.subr.mxu0 0.0
        %1154 = vmatpush1.msra.mxu0 %v1134
        %1155 = vmatprep.subr.mxu0 0.0
        %1156 = vmatpush1.msra.mxu0 %v1133
        %1157 = vmatprep.subr.mxu0 0.0
        %1158 = vmatpush1.msra.mxu0 %v1132
        %1159 = vmatprep.subr.mxu0 0.0
        %1160 = vmatpush1.msra.mxu0 %v1131
        %1161 = vmatprep.subr.mxu0 0.0
        %1162 = vmatpush1.msra.mxu0 %v1130
        %1163 = vmatprep.subr.mxu0 0.0
        %1164 = vmatpush1.msra.mxu0 %v1129
        %1165 = vmatprep.subr.mxu0 0.0
        %1166 = vmatpush1.msra.mxu0 %v1128
        %1167 = vmatprep.subr.mxu0 0.0
        %1168 = vmatpush1.msra.mxu0 %v1127
        %1169 = vmatprep.subr.mxu0 0.0
        %1170 = vmatpush1.msra.mxu0 %v1126
        %1171 = vmatprep.subr.mxu0 0.0
        %1172 = vmatpush1.msra.mxu0 %v1125
        %1173 = vmatprep.subr.mxu0 0.0
        %1174 = vmatpush2.msra.mxu0 0.0
        %1175 = vmatprep.subr.mxu0 0.0
        %1176 = vmatpush2.msra.mxu0 0.0
        %1177 = vmatprep.subr.mxu0 0.0
        %1178 = vmatpush2.msra.mxu0 0.0
        %1179 = vmatprep.subr.mxu0 0.0
        %1180 = vmatpush2.msra.mxu0 0.0
        %1181 = vmatprep.subr.mxu0 0.0
        %1182 = vmatpush2.msra.mxu0 0.0
        %1183 = vmatprep.subr.mxu0 0.0
        %1184 = vmatpush2.msra.mxu0 0.0
        %1185 = vmatprep.subr.mxu0 0.0
        %1186 = vmatpush2.msra.mxu0 0.0
        %1187 = vmatprep.subr.mxu0 0.0
        %1188 = vmatpush2.msra.mxu0 0.0
        %1189 = vmatprep.subr.mxu0 0.0
        %1190 = vmatpush2.msra.mxu0 0.0
        %1191 = vmatprep.subr.mxu0 0.0
        %1192 = vmatpush2.msra.mxu0 0.0
        %1193 = vmatprep.subr.mxu0 0.0
        %1194 = vmatpush2.msra.mxu0 0.0
        %1195 = vmatprep.subr.mxu0 0.0
        %1196 = vmatpush2.msra.mxu0 0.0
        %1197 = vmatprep.subr.mxu0 0.0
        %1198 = vmatpush2.msra.mxu0 0.0
        %1199 = vmatprep.subr.mxu0 0.0
        %1200 = vmatpush2.msra.mxu0 0.0
        %1201 = vmatprep.subr.mxu0 0.0
        %1202 = vmatpush2.msra.mxu0 0.0
        %1203 = vmatprep.subr.mxu0 0.0
        %1204 = vmatpush2.msra.mxu0 0.0
        %1205 = vmatprep.mubr.f32.mxu0 0.0
        %1206 = vmatmul.mubr.f32.gmra.mxu0 %v1117
        %v1207 = vpop.f32.mrf.mxu0
        %v1208 = vadd.f32 0.0, %v1207
        %v1209 = vpop.f32.mrf.mxu0
        %1210 = vmatprep.mubr.f32.mxu0 0.0
        %1211 = vmatmul.mubr.f32.gmra.mxu0 %v1119
        %v1212 = vpop.f32.mrf.mxu0
        %v1213 = vadd.f32 0.0, %v1212
        %v1214 = vpop.f32.mrf.mxu0
        %1215 = vmatprep.mubr.f32.mxu0 0.0
        %1216 = vmatmul.mubr.f32.gmra.mxu0 %v1121
        %v1217 = vpop.f32.mrf.mxu0
        %v1218 = vadd.f32 0.0, %v1217
        %v1219 = vpop.f32.mrf.mxu0
        %1220 = vmatprep.mubr.f32.mxu0 0.0
        %1221 = vmatmul.mubr.f32.gmra.mxu0 %v1123
        %v1222 = vpop.f32.mrf.mxu0
        %v1223 = vadd.f32 0.0, %v1222
        %v1224 = vpop.f32.mrf.mxu0
        %1225 = vdwg.mxu0
        %v1226 = vadd.f32 %v1098, %v1208
        %v1227 = vadd.f32 %v1103, %v1213
        %v1228 = vadd.f32 %v1108, %v1218
        %v1229 = vadd.f32 %v1113, %v1223
        %v1230 = vlog2.pop %v891
        %v1231 = vmul.f32 %v1230, 0.6931472
        %v1232 = vlog2.pop %v892
        %v1233 = vmul.f32 %v1232, 0.6931472
        %v1234 = vlog2.pop %v893
        %v1235 = vmul.f32 %v1234, 0.6931472
        %v1236 = vlog2.pop %v894
        %v1237 = vmul.f32 %v1236, 0.6931472
        %s1238 = scalar_lea.vmem [#allocation9], 384
        %v1239 = vld [vmem:[%s1238] sm:$0xff]
        %v1240 = vld [vmem:[%s1238 + $0x8] sm:$0xff]
        %v1241 = vld [vmem:[%s1238 + $0x10] sm:$0xff]
        %v1242 = vld [vmem:[%s1238 + $0x18] sm:$0xff]
        %v1243 = vld [vmem:[%s1238 + $0x20] sm:$0xff]
        %v1244 = vld [vmem:[%s1238 + $0x28] sm:$0xff]
        %v1245 = vld [vmem:[%s1238 + $0x30] sm:$0xff]
        %v1246 = vld [vmem:[%s1238 + $0x38] sm:$0xff]
        %v1247 = vld [vmem:[%s1238 + $0x40] sm:$0xff]
        %v1248 = vld [vmem:[%s1238 + $0x48] sm:$0xff]
        %v1249 = vld [vmem:[%s1238 + $0x50] sm:$0xff]
        %v1250 = vld [vmem:[%s1238 + $0x58] sm:$0xff]
        %v1251 = vld [vmem:[%s1238 + $0x60] sm:$0xff]
        %v1252 = vld [vmem:[%s1238 + $0x68] sm:$0xff]
        %v1253 = vld [vmem:[%s1238 + $0x70] sm:$0xff]
        %v1254 = vld [vmem:[%s1238 + $0x78] sm:$0xff]
        %1255 = vmatprep.subr.mxu0 0.0
        %1256 = vmatpush1.msra.mxu0 %v1254
        %1257 = vmatprep.subr.mxu0 0.0
        %1258 = vmatpush1.msra.mxu0 %v1253
        %1259 = vmatprep.subr.mxu0 0.0
        %1260 = vmatpush1.msra.mxu0 %v1252
        %1261 = vmatprep.subr.mxu0 0.0
        %1262 = vmatpush1.msra.mxu0 %v1251
        %1263 = vmatprep.subr.mxu0 0.0
        %1264 = vmatpush1.msra.mxu0 %v1250
        %1265 = vmatprep.subr.mxu0 0.0
        %1266 = vmatpush1.msra.mxu0 %v1249
        %1267 = vmatprep.subr.mxu0 0.0
        %1268 = vmatpush1.msra.mxu0 %v1248
        %1269 = vmatprep.subr.mxu0 0.0
        %1270 = vmatpush1.msra.mxu0 %v1247
        %1271 = vmatprep.subr.mxu0 0.0
        %1272 = vmatpush1.msra.mxu0 %v1246
        %1273 = vmatprep.subr.mxu0 0.0
        %1274 = vmatpush1.msra.mxu0 %v1245
        %1275 = vmatprep.subr.mxu0 0.0
        %1276 = vmatpush1.msra.mxu0 %v1244
        %1277 = vmatprep.subr.mxu0 0.0
        %1278 = vmatpush1.msra.mxu0 %v1243
        %1279 = vmatprep.subr.mxu0 0.0
        %1280 = vmatpush1.msra.mxu0 %v1242
        %1281 = vmatprep.subr.mxu0 0.0
        %1282 = vmatpush1.msra.mxu0 %v1241
        %1283 = vmatprep.subr.mxu0 0.0
        %1284 = vmatpush1.msra.mxu0 %v1240
        %1285 = vmatprep.subr.mxu0 0.0
        %1286 = vmatpush1.msra.mxu0 %v1239
        %1287 = vmatprep.subr.mxu0 0.0
        %1288 = vmatpush2.msra.mxu0 0.0
        %1289 = vmatprep.subr.mxu0 0.0
        %1290 = vmatpush2.msra.mxu0 0.0
        %1291 = vmatprep.subr.mxu0 0.0
        %1292 = vmatpush2.msra.mxu0 0.0
        %1293 = vmatprep.subr.mxu0 0.0
        %1294 = vmatpush2.msra.mxu0 0.0
        %1295 = vmatprep.subr.mxu0 0.0
        %1296 = vmatpush2.msra.mxu0 0.0
        %1297 = vmatprep.subr.mxu0 0.0
        %1298 = vmatpush2.msra.mxu0 0.0
        %1299 = vmatprep.subr.mxu0 0.0
        %1300 = vmatpush2.msra.mxu0 0.0
        %1301 = vmatprep.subr.mxu0 0.0
        %1302 = vmatpush2.msra.mxu0 0.0
        %1303 = vmatprep.subr.mxu0 0.0
        %1304 = vmatpush2.msra.mxu0 0.0
        %1305 = vmatprep.subr.mxu0 0.0
        %1306 = vmatpush2.msra.mxu0 0.0
        %1307 = vmatprep.subr.mxu0 0.0
        %1308 = vmatpush2.msra.mxu0 0.0
        %1309 = vmatprep.subr.mxu0 0.0
        %1310 = vmatpush2.msra.mxu0 0.0
        %1311 = vmatprep.subr.mxu0 0.0
        %1312 = vmatpush2.msra.mxu0 0.0
        %1313 = vmatprep.subr.mxu0 0.0
        %1314 = vmatpush2.msra.mxu0 0.0
        %1315 = vmatprep.subr.mxu0 0.0
        %1316 = vmatpush2.msra.mxu0 0.0
        %1317 = vmatprep.subr.mxu0 0.0
        %1318 = vmatpush2.msra.mxu0 0.0
        %1319 = vmatprep.mubr.f32.mxu0 0.0
        %1320 = vmatmul.mubr.f32.gmra.mxu0 %v1231
        %v1321 = vpop.f32.mrf.mxu0
        %v1322 = vadd.f32 0.0, %v1321
        %v1323 = vpop.f32.mrf.mxu0
        %1324 = vmatprep.mubr.f32.mxu0 0.0
        %1325 = vmatmul.mubr.f32.gmra.mxu0 %v1233
        %v1326 = vpop.f32.mrf.mxu0
        %v1327 = vadd.f32 0.0, %v1326
        %v1328 = vpop.f32.mrf.mxu0
        %1329 = vmatprep.mubr.f32.mxu0 0.0
        %1330 = vmatmul.mubr.f32.gmra.mxu0 %v1235
        %v1331 = vpop.f32.mrf.mxu0
        %v1332 = vadd.f32 0.0, %v1331
        %v1333 = vpop.f32.mrf.mxu0
        %1334 = vmatprep.mubr.f32.mxu0 0.0
        %1335 = vmatmul.mubr.f32.gmra.mxu0 %v1237
        %v1336 = vpop.f32.mrf.mxu0
        %v1337 = vadd.f32 0.0, %v1336
        %v1338 = vpop.f32.mrf.mxu0
        %1339 = vdwg.mxu0
        %v1340 = vadd.f32 %v1226, %v1322
        %v1341 = vadd.f32 %v1227, %v1327
        %v1342 = vadd.f32 %v1228, %v1332
        %v1343 = vadd.f32 %v1229, %v1337
        %v1344 = vlog2.pop %v901
        %v1345 = vmul.f32 %v1344, 0.6931472
        %v1346 = vlog2.pop %v902
        %v1347 = vmul.f32 %v1346, 0.6931472
        %v1348 = vlog2.pop %v903
        %v1349 = vmul.f32 %v1348, 0.6931472
        %v1350 = vlog2.pop %v904
        %v1351 = vmul.f32 %v1350, 0.6931472
        %s1352 = scalar_lea.vmem [#allocation9], 512
        %v1353 = vld [vmem:[%s1352] sm:$0xff]
        %v1354 = vld [vmem:[%s1352 + $0x8] sm:$0xff]
        %v1355 = vld [vmem:[%s1352 + $0x10] sm:$0xff]
        %v1356 = vld [vmem:[%s1352 + $0x18] sm:$0xff]
        %v1357 = vld [vmem:[%s1352 + $0x20] sm:$0xff]
        %v1358 = vld [vmem:[%s1352 + $0x28] sm:$0xff]
        %v1359 = vld [vmem:[%s1352 + $0x30] sm:$0xff]
        %v1360 = vld [vmem:[%s1352 + $0x38] sm:$0xff]
        %v1361 = vld [vmem:[%s1352 + $0x40] sm:$0xff]
        %v1362 = vld [vmem:[%s1352 + $0x48] sm:$0xff]
        %v1363 = vld [vmem:[%s1352 + $0x50] sm:$0xff]
        %v1364 = vld [vmem:[%s1352 + $0x58] sm:$0xff]
        %v1365 = vld [vmem:[%s1352 + $0x60] sm:$0xff]
        %v1366 = vld [vmem:[%s1352 + $0x68] sm:$0xff]
        %v1367 = vld [vmem:[%s1352 + $0x70] sm:$0xff]
        %v1368 = vld [vmem:[%s1352 + $0x78] sm:$0xff]
        %1369 = vmatprep.subr.mxu0 0.0
        %1370 = vmatpush1.msra.mxu0 %v1368
        %1371 = vmatprep.subr.mxu0 0.0
        %1372 = vmatpush1.msra.mxu0 %v1367
        %1373 = vmatprep.subr.mxu0 0.0
        %1374 = vmatpush1.msra.mxu0 %v1366
        %1375 = vmatprep.subr.mxu0 0.0
        %1376 = vmatpush1.msra.mxu0 %v1365
        %1377 = vmatprep.subr.mxu0 0.0
        %1378 = vmatpush1.msra.mxu0 %v1364
        %1379 = vmatprep.subr.mxu0 0.0
        %1380 = vmatpush1.msra.mxu0 %v1363
        %1381 = vmatprep.subr.mxu0 0.0
        %1382 = vmatpush1.msra.mxu0 %v1362
        %1383 = vmatprep.subr.mxu0 0.0
        %1384 = vmatpush1.msra.mxu0 %v1361
        %1385 = vmatprep.subr.mxu0 0.0
        %1386 = vmatpush1.msra.mxu0 %v1360
        %1387 = vmatprep.subr.mxu0 0.0
        %1388 = vmatpush1.msra.mxu0 %v1359
        %1389 = vmatprep.subr.mxu0 0.0
        %1390 = vmatpush1.msra.mxu0 %v1358
        %1391 = vmatprep.subr.mxu0 0.0
        %1392 = vmatpush1.msra.mxu0 %v1357
        %1393 = vmatprep.subr.mxu0 0.0
        %1394 = vmatpush1.msra.mxu0 %v1356
        %1395 = vmatprep.subr.mxu0 0.0
        %1396 = vmatpush1.msra.mxu0 %v1355
        %1397 = vmatprep.subr.mxu0 0.0
        %1398 = vmatpush1.msra.mxu0 %v1354
        %1399 = vmatprep.subr.mxu0 0.0
        %1400 = vmatpush1.msra.mxu0 %v1353
        %1401 = vmatprep.subr.mxu0 0.0
        %1402 = vmatpush2.msra.mxu0 0.0
        %1403 = vmatprep.subr.mxu0 0.0
        %1404 = vmatpush2.msra.mxu0 0.0
        %1405 = vmatprep.subr.mxu0 0.0
        %1406 = vmatpush2.msra.mxu0 0.0
        %1407 = vmatprep.subr.mxu0 0.0
        %1408 = vmatpush2.msra.mxu0 0.0
        %1409 = vmatprep.subr.mxu0 0.0
        %1410 = vmatpush2.msra.mxu0 0.0
        %1411 = vmatprep.subr.mxu0 0.0
        %1412 = vmatpush2.msra.mxu0 0.0
        %1413 = vmatprep.subr.mxu0 0.0
        %1414 = vmatpush2.msra.mxu0 0.0
        %1415 = vmatprep.subr.mxu0 0.0
        %1416 = vmatpush2.msra.mxu0 0.0
        %1417 = vmatprep.subr.mxu0 0.0
        %1418 = vmatpush2.msra.mxu0 0.0
        %1419 = vmatprep.subr.mxu0 0.0
        %1420 = vmatpush2.msra.mxu0 0.0
        %1421 = vmatprep.subr.mxu0 0.0
        %1422 = vmatpush2.msra.mxu0 0.0
        %1423 = vmatprep.subr.mxu0 0.0
        %1424 = vmatpush2.msra.mxu0 0.0
        %1425 = vmatprep.subr.mxu0 0.0
        %1426 = vmatpush2.msra.mxu0 0.0
        %1427 = vmatprep.subr.mxu0 0.0
        %1428 = vmatpush2.msra.mxu0 0.0
        %1429 = vmatprep.subr.mxu0 0.0
        %1430 = vmatpush2.msra.mxu0 0.0
        %1431 = vmatprep.subr.mxu0 0.0
        %1432 = vmatpush2.msra.mxu0 0.0
        %1433 = vmatprep.mubr.f32.mxu0 0.0
        %1434 = vmatmul.mubr.f32.gmra.mxu0 %v1345
        %v1435 = vpop.f32.mrf.mxu0
        %v1436 = vadd.f32 0.0, %v1435
        %v1437 = vpop.f32.mrf.mxu0
        %1438 = vmatprep.mubr.f32.mxu0 0.0
        %1439 = vmatmul.mubr.f32.gmra.mxu0 %v1347
        %v1440 = vpop.f32.mrf.mxu0
        %v1441 = vadd.f32 0.0, %v1440
        %v1442 = vpop.f32.mrf.mxu0
        %1443 = vmatprep.mubr.f32.mxu0 0.0
        %1444 = vmatmul.mubr.f32.gmra.mxu0 %v1349
        %v1445 = vpop.f32.mrf.mxu0
        %v1446 = vadd.f32 0.0, %v1445
        %v1447 = vpop.f32.mrf.mxu0
        %1448 = vmatprep.mubr.f32.mxu0 0.0
        %1449 = vmatmul.mubr.f32.gmra.mxu0 %v1351
        %v1450 = vpop.f32.mrf.mxu0
        %v1451 = vadd.f32 0.0, %v1450
        %v1452 = vpop.f32.mrf.mxu0
        %1453 = vdwg.mxu0
        %v1454 = vadd.f32 %v1340, %v1436
        %v1455 = vadd.f32 %v1341, %v1441
        %v1456 = vadd.f32 %v1342, %v1446
        %v1457 = vadd.f32 %v1343, %v1451
        %1458 = vst [vmem:[%s222] sm:$0xff] %v1454
        %1459 = vst [vmem:[%s222 + $0x8] sm:$0xff] %v1455
        %1460 = vst [vmem:[%s222 + $0x10] sm:$0xff] %v1456
        %1461 = vst [vmem:[%s222 + $0x18] sm:$0xff] %v1457
        %s1462 = sand.u32 %s102, 1
        %s1463 = scalar_lea.sflag [#allocation6], %s1462
        %s1464 = sand.u32 %s102, 1
        %s1465 = smul.addr %s1464, 32
        %s1466 = scalar_lea.vmem [#allocation10], %s1465
        // Predicated region
        $region45: #{tpu_custom_call.1} parent=31 // pred_check
          %p1467 = pneg %p112
        $region46: #{tpu_custom_call.1} parent=31 // pred_check_branch
          %1469 = sbr.rel (%p1467) target = $region48
        $region47: #{tpu_custom_call.1} parent=31 // pred_region
          %s1470 = smul.u32 4, %s26
          %s1472 = ssub.s32 512, 512
          %1473 = vsyncadd %s1463, %s1472
          %s1474 = smul.addr %s1470, 128
          %s1475 = scalar_lea.hbm %s4, %s1474
          %s1476 = sshll.u32 %s1466, 4
          %s1477 = int_to_ptr.vmem [resolvable:$true] %s1476
          %1482 = dma.vmem_to_hbm [thread:$0]  %s1477, 512, %s1475, %s1463, 128, 128, 8
        $region48: #{tpu_custom_call.1} parent=31 // pred_fallthru
          _
      $region32: #{tpu_custom_call.1} parent=5 // pred_fallthru
        _
      %p1483 = scmp.le.s32.totalorder 2, %s21
      // Predicated region
      $region49: #{tpu_custom_call.1} parent=5 // pred_check
        %p1484 = pneg %p1483
      $region50: #{tpu_custom_call.1} parent=5 // pred_check_branch
        %1486 = sbr.rel (%p1484) target = $region52
      $region51: #{tpu_custom_call.1} parent=5 // pred_region
        %s1487 = ssub.s32 %s21, 2
        // Predicated region
        $region53: #{tpu_custom_call.1} parent=51 // pred_check
          %p1488 = pneg %p118
        $region54: #{tpu_custom_call.1} parent=51 // pred_check_branch
          %1490 = sbr.rel (%p1488) target = $region56
        $region55: #{tpu_custom_call.1} parent=51 // pred_region
          %s1491 = sand.u32 %s103, 1
          %s1492 = scalar_lea.sflag [#allocation6], %s1491
          %s1493 = sand.u32 %s103, 1
          %s1494 = smul.addr %s1493, 32
          %s1495 = scalar_lea.vmem [#allocation10], %s1494
          %1496 = dma.done %s1492, 512
        $region56: #{tpu_custom_call.1} parent=51 // pred_fallthru
          _
      $region52: #{tpu_custom_call.1} parent=5 // pred_fallthru
        _
    $region6: #{tpu_custom_call.1} parent=1 // loop_footer
      %s25 = sadd.s32 1, %s21
    $region7: #{tpu_custom_call.1} parent=1 // loop_footer_branch
      %20 = sbr.rel target = $region3
    $region8: #{tpu_custom_call.1} parent=1 // loop_exit
      _
    %1497 = vsyncpa [#allocation5], 1
    %s1498 = scalar_lea.sflag [#allocation5], 1
    %1499 = vsyncpa %s1498, 1
    %1500 = vsyncpa [#allocation8], 1
    %1501 = vsyncpa [#allocation6], 1
    %s1502 = scalar_lea.sflag [#allocation6], 1
    %1503 = vsyncpa %s1502, 1

</llo_original>
